<compile_context>
chip_gen: v5e
topology: v5e:2x2
jax: 0.10.0
libtpu: 0.0.40
codegen_flags: <defaults>
</compile_context>

<pallas_src>
import math
import functools

import jax
import jax.numpy as jnp
from jax.experimental import pallas as pl
from jax.experimental.pallas import tpu as pltpu


def _round_up(n, m):
    return ((n + m - 1) // m) * m


# ----------------------------------------------------------------------------- #
# Pallas kernel 1: fused spectral block, Bblk batches packed into the matmul M
#   SHT(L) -> vel conv -> ISHT(L) -> ReLU -> lin conv -> SHT(DL) -> affine -> ISHT(DL)
# ----------------------------------------------------------------------------- #
def _spectral_kernel(x_ref, area_ref, ylT_ref, yl_ref, ydT_ref, yd_ref,
                     velw_ref, velb_ref, linw_ref, linb_ref,
                     waff_ref, baff_ref, o_ref, *, bblk, in_ch, C, Rp):
    area = area_ref[...]                              # (1, V)
    ylT = ylT_ref[...]                                # (V, Kp)
    velb = velb_ref[...]                              # (C, Kp) pre-broadcast
    Kp = velb.shape[1]

    # --- per-batch SHT(L) + velocity 1x1 conv (tiny in_ch contraction on VPU) --- #
    c2_parts = []
    for b in range(bblk):                             # static unroll, bblk small
        c_b = jnp.dot(x_ref[b] * area, ylT,
                      preferred_element_type=jnp.float32)      # (in_ch, Kp)
        acc = velb
        for i in range(in_ch):                        # in_ch == 2
            acc = acc + velw_ref[i] * c_b[i:i + 1, :]          # (C, Kp) FMA
        c2_parts.append(acc)
    c2 = jnp.concatenate(c2_parts, axis=0)            # (bblk*C, Kp), 8-aligned pieces

    # --- ISHT(L) + ReLU: one MXU matmul for the whole batch block --------------- #
    xs = jnp.maximum(jnp.dot(c2, yl_ref[...],
                             preferred_element_type=jnp.float32), 0.0)  # (bblk*C, V)

    # --- linear 1x1 conv (C -> Rp), per-batch (weights shared) ------------------ #
    linw = linw_ref[...]                              # (Rp, C)
    linb = linb_ref[...]                              # (Rp, V) pre-broadcast
    y = jnp.concatenate(
        [jnp.dot(linw, xs[b * C:(b + 1) * C, :],
                 preferred_element_type=jnp.float32) + linb
         for b in range(bblk)], axis=0)               # (bblk*Rp, V)

    # --- SHT(DL) -> spectral affine -> ISHT(DL), batch packed ------------------- #
    c3 = jnp.dot(y * area, ydT_ref[...],
                 preferred_element_type=jnp.float32)  # (bblk*Rp, Kp)
    waff = waff_ref[...]
    baff = baff_ref[...]
    c3 = jnp.concatenate(
        [c3[b * Rp:(b + 1) * Rp, :] * waff + baff for b in range(bblk)], axis=0)
    out = jnp.dot(c3, yd_ref[...],
                  preferred_element_type=jnp.float32)  # (bblk*Rp, V)

    for b in range(bblk):                              # 8-row aligned, unmasked stores
        o_ref[b] = out[b * Rp:(b + 1) * Rp, :]


def _spectral_vmem_limit(V, Kp, bblk, in_ch, C, Rp):
    f32 = 4
    bases = 4 * V * Kp                                    # 2 analysis + 2 synthesis bases
    streams = bblk * (in_ch + Rp) * V                     # x block + output block
    params = in_ch * C * Kp + C * Kp + Rp * C + Rp * V + 2 * Rp * Kp + V
    temps = bblk * (C * Kp + C * V + Rp * V + Rp * Kp) + in_ch * Kp
    need = f32 * (2 * (bases + streams + params) + temps)  # double-buffered tiles + temps
    return int(min(max(need + (4 << 20), 16 << 20), 48 << 20))


def spectral_block(x, geom, params):
    """x (B, in_ch, V) -> (B, Rp=8, V).  One pallas_call, Bblk batches per grid step."""
    B, in_ch, V = x.shape
    Kp = geom["Y_L_pad"].shape[0]
    C = params["vel_b_bc"].shape[0]
    Rp = params["lin_w_pad"].shape[0]
    bblk = 1
    for cand in (8, 4, 2, 1):                          # largest divisor of B up to 8
        if B % cand == 0:
            bblk = cand
            break
    return pl.pallas_call(
        functools.partial(_spectral_kernel, bblk=bblk, in_ch=in_ch, C=C, Rp=Rp),
        out_shape=jax.ShapeDtypeStruct((B, Rp, V), jnp.float32),
        grid_spec=pltpu.PrefetchScalarGridSpec(
            num_scalar_prefetch=0, grid=(B // bblk,),
            in_specs=[
                pl.BlockSpec((bblk, in_ch, V), lambda g: (g, 0, 0)),   # signal block
                pl.BlockSpec((1, V), lambda g: (0, 0)),                # area row
                pl.BlockSpec((V, Kp), lambda g: (0, 0)),               # Y_L^T (analysis)
                pl.BlockSpec((Kp, V), lambda g: (0, 0)),               # Y_L   (synthesis)
                pl.BlockSpec((V, Kp), lambda g: (0, 0)),               # Y_DL^T
                pl.BlockSpec((Kp, V), lambda g: (0, 0)),               # Y_DL
                pl.BlockSpec((in_ch, C, Kp), lambda g: (0, 0, 0)),     # vel weights (pre-bcast)
                pl.BlockSpec((C, Kp), lambda g: (0, 0)),               # vel bias    (pre-bcast)
                pl.BlockSpec((Rp, C), lambda g: (0, 0)),               # linear weights
                pl.BlockSpec((Rp, V), lambda g: (0, 0)),               # linear bias (pre-bcast)
                pl.BlockSpec((Rp, Kp), lambda g: (0, 0)),              # spectral w
                pl.BlockSpec((Rp, Kp), lambda g: (0, 0)),              # spectral b
            ],
            out_specs=pl.BlockSpec((bblk, Rp, V), lambda g: (g, 0, 0))),
        compiler_params=pltpu.CompilerParams(
            dimension_semantics=("parallel",),
            vmem_limit_bytes=_spectral_vmem_limit(V, Kp, bblk, in_ch, C, Rp)),
    )(x, geom["area_row"], geom["YT_L_pad"], geom["Y_L_pad"],
      geom["YT_DL_pad"], geom["Y_DL_pad"],
      params["vel_w_bc"], params["vel_b_bc"], params["lin_w_pad"],
      params["lin_b_bc"], params["w_pad"], params["b_pad"])


# ----------------------------------------------------------------------------- #
# Pallas kernel 2: nearest-vertex query (MXU similarity + lane-dense argmax)
# ----------------------------------------------------------------------------- #
def _nearest_kernel(q_ref, p_ref, idx_ref, *, n_valid):
    q = q_ref[0]                                       # (8, tq): 3 coord rows + zero pad
    p = p_ref[...]                                     # (Vp, 8): 3 coord cols + zero pad
    sim = jnp.dot(p, q, preferred_element_type=jnp.float32)   # (Vp, tq) on the MXU
    vp, tq = sim.shape
    ids = jax.lax.broadcasted_iota(jnp.int32, (vp, tq), 0)
    sim = jnp.where(ids < n_valid, sim, -jnp.inf)      # mask padded vertices
    # TODO(synk): single-pass jnp.argmax (variadic reduce) does not lower on Mosaic;
    #             keep max -> select -> min reduction (still lane-dense output).
    m = jnp.max(sim, axis=0, keepdims=True)            # (1, tq)
    idx = jnp.min(jnp.where(sim >= m, ids, jnp.int32(vp)), axis=0, keepdims=True)
    idx_ref[0] = idx.astype(jnp.int32)                 # lane-dense (1, tq) store


def pack_points(pts):
    """(V, 3) -> (Vp, 8) with coords in the first 3 columns, zero elsewhere."""
    V = pts.shape[0]
    Vp = _round_up(V, 8)
    return jnp.zeros((Vp, 8), jnp.float32).at[:V, :3].set(pts.astype(jnp.float32))


def nearest_index(q, pts_pack, n_valid):
    """argmax_v <q, pts[v]> for (near-)unit vectors.
    q (B, Nq, 3), pts_pack (Vp, 8) -> (B, Nq) int32."""
    B, Nq, _ = q.shape
    Vp = pts_pack.shape[0]
    q_pad = jnp.zeros((B, 8, Nq), jnp.float32).at[:, :3, :].set(
        jnp.swapaxes(q.astype(jnp.float32), -1, -2))
    tq = 128 if Nq % 128 == 0 else Nq                  # >=2 parallel steps at B==1 (v7x)
    out = pl.pallas_call(
        functools.partial(_nearest_kernel, n_valid=n_valid),
        out_shape=jax.ShapeDtypeStruct((B, 1, Nq), jnp.int32),
        grid_spec=pltpu.PrefetchScalarGridSpec(
            num_scalar_prefetch=0, grid=(B, Nq // tq),
            in_specs=[pl.BlockSpec((1, 8, tq), lambda b, j: (b, 0, j)),
                      pl.BlockSpec((Vp, 8), lambda b, j: (0, 0))],
            out_specs=pl.BlockSpec((1, 1, tq), lambda b, j: (b, 0, j))),
        compiler_params=pltpu.CompilerParams(
            dimension_semantics=("parallel", "parallel")),
    )(q_pad, pts_pack)
    return out[:, 0, :]


# ----------------------------------------------------------------------------- #
# JAX glue (tiny rotations, tree-query approximation, barycentric resampling)
# ----------------------------------------------------------------------------- #
def rot6d_to_matrix(p):
    """6D rotation parameterization (first two rows) -> 3x3 rotation via Gram-Schmidt."""
    a1, a2 = p[..., 0:3], p[..., 3:6]
    r1 = a1 / (jnp.linalg.norm(a1, axis=-1, keepdims=True) + 1e-8)
    a2p = a2 - jnp.sum(r1 * a2, axis=-1, keepdims=True) * r1
    r2 = a2p / (jnp.linalg.norm(a2p, axis=-1, keepdims=True) + 1e-8)
    r3 = jnp.cross(r1, r2)
    return jnp.stack([r1, r2, r3], axis=-2)


def tree_query_approx(q, pts, pts_pack, faces, vert2face):
    """Approximate TriangleSearch/KD-tree query.
    q (B, Nq, 3) query points, pts (V, 3) mesh points, pts_pack (Vp, 8), faces (F, 3).
    Returns fid (B, Nq) and bary (B, Nq, 3).
    # TODO(synk): exact triangle search + true barycentric coordinates not implemented;
    #             approximated by nearest-vertex face + normalized inverse-distance weights.
    """
    nv = nearest_index(q, pts_pack, pts.shape[0])      # (B, Nq)  -- Pallas kernel
    fid = vert2face[nv]                                # (B, Nq)
    tri = faces[fid]                                   # (B, Nq, 3)
    tv = pts[tri]                                      # (B, Nq, 3, 3)
    d = jnp.linalg.norm(q[..., None, :] - tv, axis=-1)     # (B, Nq, 3)
    wgt = 1.0 / (d + 1e-6)
    bary = wgt / jnp.sum(wgt, axis=-1, keepdims=True)
    return fid, bary


def bary_resample(signal, faces, fid, bary):
    """signal (B, C, V), fid (Bq, Nq), bary (Bq, Nq, 3) -> (B, C, Nq)."""
    B = signal.shape[0]
    if fid.shape[0] == 1 and B > 1:
        fid = jnp.broadcast_to(fid, (B,) + fid.shape[1:])
        bary = jnp.broadcast_to(bary, (B,) + bary.shape[1:])
    tri = faces[fid]                                   # (B, Nq, 3)

    def per_batch(sig_b, tri_b, bary_b):
        g = sig_b[:, tri_b.reshape(-1)].reshape(sig_b.shape[0], tri_b.shape[0], 3)
        return jnp.sum(g * bary_b[None, :, :], axis=-1)

    return jax.vmap(per_batch)(signal, tri, bary)


# ----------------------------------------------------------------------------- #
# SHWarpBlock / SPHARM_Reg forward
# ----------------------------------------------------------------------------- #
def warp_forward(params, geom, x):
    """SHWarpBlock.forward.  x: (B, in_ch, V) -> warped vertex coords (B, V, 3)."""
    v, faces, v2f = geom["v"], geom["f"], geom["v2f"]

    # x @ |w0| * 0.001 and linear0 are tiny -- plain JAX (XLA fuses them).
    s = jnp.einsum("biv,v->bi", x, jnp.abs(params["w0"][:, 0])) * 0.001   # (B, in_ch)
    r = s @ params["lin0_w"].T + params["lin0_b"][None, :]                # (B, 6)

    # rigid = Deform(v, f, 0): global 6D-parameterized rotation of the sphere.
    # TODO(synk): original Deform internals unavailable; 6D rot -> rotate vertices.
    R = rot6d_to_matrix(r)                            # (B, 3, 3)
    q = jnp.einsum("vd,bed->bve", v, R)               # (B, V, 3)

    # tree.query on the fixed sphere + barycentric resampling of the input signal
    fid, bary = tree_query_approx(q, v, geom["pts_pack"], faces, v2f)
    x = bary_resample(x, faces, fid, bary)            # (B, in_ch, V)

    # Fused spectral block (single Pallas kernel, Bblk batches per grid step):
    #   SHT(L) -> velocity conv -> ISHT(L) -> ReLU -> linear -> SHT(DL) -> x*w+b -> ISHT(DL)
    # TODO(synk): full SPHARM_Net (depth-D spectral U-blocks) approximated by one spectral conv.
    x = spectral_block(x, geom, params)[:, :6, :]     # (B, 6, V) (kernel emits Rp=8)
    x = jnp.swapaxes(x, -1, -2)                       # (B, V, 6)

    # deform = Deform(v, f, k): per-vertex 6D rotation applied to the sphere vertices.
    # TODO(synk): Deform(k=6) neighborhood smoothing not reproduced.
    Rv = rot6d_to_matrix(x)                           # (B, V, 3, 3)
    return jnp.einsum("bvij,vj->bvi", Rv, v)          # (B, V, 3)


def spharm_reg_forward(params, geom, x, mask=None):
    """SPHARM_Reg.forward: returns (warped vertices (B, V, 3), resampled input (B, in_ch, V))."""
    v, faces, v2f = geom["v"], geom["f"], geom["v2f"]
    warped = warp_forward(params, geom, x)
    if mask is not None:
        x = x * mask
    # TriangleSearch on the warped mesh (batch squeezed as in the reference),
    # queried at the original sphere vertices.
    warped_pack = pack_points(warped[0])
    fid, bary = tree_query_approx(v[None, ...], warped[0], warped_pack, faces, v2f)
    x = bary_resample(x, faces, fid, bary)
    return warped, x


# ----------------------------------------------------------------------------- #
# Deterministic synthetic geometry + parameters, and the driver
# ----------------------------------------------------------------------------- #
def build_geometry_and_params(key, *, V=256, in_ch=2, C=16, L=8, DL=4):
    k = jax.random.split(key, 8)
    K_L, K_DL = (L + 1) ** 2, (DL + 1) ** 2
    Kp = _round_up(max(K_L, K_DL), 128)               # SH coeff axis lane-padded
    rot_param, Rp = 6, 8                              # channel dim padded 6 -> 8

    # synthetic unit-sphere vertices / faces (read_mesh replacement)
    # TODO(synk): real icosphere mesh + vertex_area + spharm_real not available in-script.
    v = jax.random.normal(k[0], (V, 3), jnp.float32)
    v = v / jnp.linalg.norm(v, axis=-1, keepdims=True)
    f = jnp.stack([jnp.arange(V), (jnp.arange(V) + 1) % V, (jnp.arange(V) + 2) % V],
                  axis=-1).astype(jnp.int32)          # (F=V, 3)
    v2f = jnp.arange(V, dtype=jnp.int32)              # vertex i belongs to face i

    area = (4.0 * math.pi / V) * (1.0 + 0.1 * jax.random.uniform(k[1], (V,), jnp.float32))

    # synthetic real SH basis Y (K_L, V): row 0 is the true constant Y_00 = 1/sqrt(4*pi),
    # zero-padded to Kp rows (padding is numerically a no-op).
    Y = 0.05 * jax.random.normal(k[2], (K_L, V), jnp.float32)
    Y = Y.at[0, :].set(1.0 / math.sqrt(4.0 * math.pi))
    Y_L_pad = jnp.zeros((Kp, V), jnp.float32).at[:K_L].set(Y)
    Y_DL_pad = jnp.zeros((Kp, V), jnp.float32).at[:K_DL].set(Y[:K_DL])

    # --- SHWarpBlock parameters (deterministic) ---
    w0 = (area.reshape(-1, 1) / jnp.sum(area)).astype(jnp.float32)

    lin0_w = jnp.zeros((rot_param, in_ch), jnp.float32)        # linear0.weight.zero_()
    ang = 0.05                                                 # matrix_exp(skew([.05,0,0]))
    rot = jnp.array([[1.0, 0.0, 0.0],
                     [0.0, math.cos(ang), -math.sin(ang)],
                     [0.0, math.sin(ang), math.cos(ang)]], jnp.float32)
    lin0_b = rot[:2, :].reshape(-1)                            # (6,)

    vel_w = 0.1 * jax.random.normal(k[3], (C, in_ch), jnp.float32)
    vel_b = 0.01 * jax.random.normal(k[4], (C,), jnp.float32)
    lin_w = 0.1 * jax.random.normal(k[5], (rot_param, C), jnp.float32)
    lin_b = 0.01 * jax.random.normal(k[6], (rot_param,), jnp.float32)

    w = jnp.zeros((rot_param, K_DL), jnp.float32)
    b = jax.random.uniform(k[7], (rot_param, K_DL), jnp.float32, -0.005, 0.005)
    b = b.at[0, 0].set(math.sqrt(4.0 * math.pi)).at[4, 0].set(math.sqrt(4.0 * math.pi))

    # Pre-broadcast / pad everything to its in-kernel shape (no lane-width-1 tiles).
    vel_w_bc = jnp.broadcast_to(vel_w.T[:, :, None], (in_ch, C, Kp)).astype(jnp.float32)
    vel_b_bc = jnp.broadcast_to(vel_b[:, None], (C, Kp)).astype(jnp.float32)
    lin_w_pad = jnp.zeros((Rp, C), jnp.float32).at[:rot_param].set(lin_w)
    lin_b_bc = jnp.zeros((Rp, V), jnp.float32).at[:rot_param, :].set(
        jnp.broadcast_to(lin_b[:, None], (rot_param, V)))
    w_pad = jnp.zeros((Rp, Kp), jnp.float32).at[:rot_param, :K_DL].set(w)
    b_pad = jnp.zeros((Rp, Kp), jnp.float32).at[:rot_param, :K_DL].set(b)

    geom = dict(v=v, f=f, v2f=v2f, area_row=area.reshape(1, V),
                Y_L_pad=Y_L_pad, YT_L_pad=Y_L_pad.T,
                Y_DL_pad=Y_DL_pad, YT_DL_pad=Y_DL_pad.T,
                pts_pack=pack_points(v))               # fixed-sphere query table, built once
    params = dict(w0=w0, lin0_w=lin0_w, lin0_b=lin0_b,
                  vel_w_bc=vel_w_bc, vel_b_bc=vel_b_bc,
                  lin_w_pad=lin_w_pad, lin_b_bc=lin_b_bc,
                  w_pad=w_pad, b_pad=b_pad)
    return geom, params


if __name__ == "__main__":
    key = jax.random.PRNGKey(0)
    kg, ki = jax.random.split(key)

    B, in_ch, V = 2, 2, 256
    geom, params = build_geometry_and_params(kg, V=V, in_ch=in_ch, C=16, L=8, DL=4)

    x = jax.random.normal(ki, (B, in_ch, V), jnp.float32)

    fwd = jax.jit(lambda inp: spharm_reg_forward(params, geom, inp))
    warped, resampled = fwd(x)
    jax.block_until_ready((warped, resampled))

    assert warped.shape == (B, V, 3) and resampled.shape == (B, in_ch, V)
    assert bool(jnp.all(jnp.isfinite(warped))) and bool(jnp.all(jnp.isfinite(resampled)))
    print("KERNEL_OK")
</pallas_src>

<mosaic_0001>
module attributes {stable_mosaic.version = 11 : i64} {
  func.func @_nearest_kernel(%arg0: i32, %arg1: i32, %arg2: memref<1x8x128xf32, #tpu.memory_space<vmem>>, %arg3: memref<256x8xf32, #tpu.memory_space<vmem>>, %arg4: memref<1x1x128xi32, #tpu.memory_space<vmem>>) attributes {dimension_semantics = [#tpu.dimension_semantics<parallel>, #tpu.dimension_semantics<parallel>], iteration_bounds = array<i64: 2, 2>, scalar_prefetch = 0 : i64, scratch_operands = 0 : i64, tpu.core_type = #tpu.core_type<tc>, window_params = [{transform_indices = @transform_0, window_bounds = array<i64: 1, 8, 128>}, {pipeline_mode = #tpu.pipeline_mode<synchronous>, transform_indices = @transform_1, window_bounds = array<i64: 256, 8>}, {transform_indices = @transform_2, window_bounds = array<i64: 1, 1, 128>}]} {
    %c0 = arith.constant 0 : index
    %c0_0 = arith.constant 0 : index
    %c0_1 = arith.constant 0 : index
    %0 = vector.load %arg2[%c0, %c0_0, %c0_1] : memref<1x8x128xf32, #tpu.memory_space<vmem>>, vector<1x8x128xf32>
    %1 = vector.shape_cast %0 : vector<1x8x128xf32> to vector<8x128xf32>
    %c0_2 = arith.constant 0 : index
    %c0_3 = arith.constant 0 : index
    %2 = vector.load %arg3[%c0_2, %c0_3] : memref<256x8xf32, #tpu.memory_space<vmem>>, vector<256x8xf32>
    %cst = arith.constant dense<0.000000e+00> : vector<256x128xf32>
    %3 = tpu.matmul %2, %1, %cst {dimension_numbers = #tpu.dot_dimension_numbers<[1], [0], [0], [1], [0, 0, 1, 1], [], []>} : vector<256x8xf32>, vector<8x128xf32>, vector<256x128xf32> -> vector<256x128xf32>
    %4 = tpu.iota {dimensions = array<i32: 0>} : vector<256x128xi32>
    %c256_i32 = arith.constant 256 : i32
    %5 = vector.broadcast %c256_i32 : i32 to vector<256x128xi32>
    %6 = arith.cmpi slt, %4, %5 : vector<256x128xi32>
    %cst_4 = arith.constant 0xFF800000 : f32
    %7 = vector.broadcast %cst_4 : f32 to vector<256x128xf32>
    %8 = arith.select %6, %3, %7 : vector<256x128xi1>, vector<256x128xf32>
    %cst_5 = arith.constant dense<0xFF800000> : vector<128xf32>
    %9 = vector.multi_reduction <maximumf>, %8, %cst_5 [0] : vector<256x128xf32> to vector<128xf32>
    %10 = vector.shape_cast %9 : vector<128xf32> to vector<1x128xf32>
    %11 = vector.broadcast %10 : vector<1x128xf32> to vector<256x128xf32>
    %12 = arith.cmpf oge, %8, %11 : vector<256x128xf32>
    %c256_i32_6 = arith.constant 256 : i32
    %13 = vector.broadcast %c256_i32_6 : i32 to vector<256x128xi32>
    %14 = arith.select %12, %4, %13 : vector<256x128xi1>, vector<256x128xi32>
    %cst_7 = arith.constant dense<2147483647> : vector<128xi32>
    %15 = vector.multi_reduction <minsi>, %14, %cst_7 [0] : vector<256x128xi32> to vector<128xi32>
    %16 = vector.shape_cast %15 : vector<128xi32> to vector<1x128xi32>
    %c0_8 = arith.constant 0 : index
    %c0_9 = arith.constant 0 : index
    %c0_10 = arith.constant 0 : index
    %17 = vector.load %arg4[%c0_8, %c0_9, %c0_10] : memref<1x1x128xi32, #tpu.memory_space<vmem>>, vector<1x1x128xi32>
    %18 = vector.shape_cast %17 : vector<1x1x128xi32> to vector<1x128xi32>
    %19 = vector.shape_cast %16 : vector<1x128xi32> to vector<1x1x128xi32>
    tpu.vector_store %arg4[%c0_8, %c0_9, %c0_10], %19 {strides = array<i32>} : memref<1x1x128xi32, #tpu.memory_space<vmem>>, vector<1x1x128xi32>,
    return
  }
  func.func @transform_0(%arg0: i32, %arg1: i32) -> (i32, i32, i32) {
    %c0_i32 = arith.constant 0 : i32
    %c0_i32_0 = arith.constant 0 : i32
    return %arg0, %c0_i32, %arg1 : i32, i32, i32
  }
  func.func @transform_1(%arg0: i32, %arg1: i32) -> (i32, i32) {
    %c0_i32 = arith.constant 0 : i32
    %c0_i32_0 = arith.constant 0 : i32
    %c0_i32_1 = arith.constant 0 : i32
    return %c0_i32, %c0_i32_0 : i32, i32
  }
  func.func @transform_2(%arg0: i32, %arg1: i32) -> (i32, i32, i32) {
    %c0_i32 = arith.constant 0 : i32
    %c0_i32_0 = arith.constant 0 : i32
    return %arg0, %c0_i32, %arg1 : i32, i32, i32
  }
}

module attributes {stable_mosaic.version = 11 : i64} {
  func.func @_spectral_kernel(%arg0: i32, %arg1: memref<2x2x256xf32, #tpu.memory_space<vmem>>, %arg2: memref<1x256xf32, #tpu.memory_space<vmem>>, %arg3: memref<256x128xf32, #tpu.memory_space<vmem>>, %arg4: memref<128x256xf32, #tpu.memory_space<vmem>>, %arg5: memref<256x128xf32, #tpu.memory_space<vmem>>, %arg6: memref<128x256xf32, #tpu.memory_space<vmem>>, %arg7: memref<2x16x128xf32, #tpu.memory_space<vmem>>, %arg8: memref<16x128xf32, #tpu.memory_space<vmem>>, %arg9: memref<8x16xf32, #tpu.memory_space<vmem>>, %arg10: memref<8x256xf32, #tpu.memory_space<vmem>>, %arg11: memref<8x128xf32, #tpu.memory_space<vmem>>, %arg12: memref<8x128xf32, #tpu.memory_space<vmem>>, %arg13: memref<2x8x256xf32, #tpu.memory_space<vmem>>) attributes {dimension_semantics = [#tpu.dimension_semantics<parallel>], iteration_bounds = array<i64: 1>, scalar_prefetch = 0 : i64, scratch_operands = 0 : i64, tpu.core_type = #tpu.core_type<tc>, window_params = [{transform_indices = @transform_0, window_bounds = array<i64: 2, 2, 256>}, {pipeline_mode = #tpu.pipeline_mode<synchronous>, transform_indices = @transform_1, window_bounds = array<i64: 1, 256>}, {pipeline_mode = #tpu.pipeline_mode<synchronous>, transform_indices = @transform_2, window_bounds = array<i64: 256, 128>}, {pipeline_mode = #tpu.pipeline_mode<synchronous>, transform_indices = @transform_3, window_bounds = array<i64: 128, 256>}, {pipeline_mode = #tpu.pipeline_mode<synchronous>, transform_indices = @transform_4, window_bounds = array<i64: 256, 128>}, {pipeline_mode = #tpu.pipeline_mode<synchronous>, transform_indices = @transform_5, window_bounds = array<i64: 128, 256>}, {pipeline_mode = #tpu.pipeline_mode<synchronous>, transform_indices = @transform_6, window_bounds = array<i64: 2, 16, 128>}, {pipeline_mode = #tpu.pipeline_mode<synchronous>, transform_indices = @transform_7, window_bounds = array<i64: 16, 128>}, {pipeline_mode = #tpu.pipeline_mode<synchronous>, transform_indices = @transform_8, window_bounds = array<i64: 8, 16>}, {pipeline_mode = #tpu.pipeline_mode<synchronous>, transform_indices = @transform_9, window_bounds = array<i64: 8, 256>}, {pipeline_mode = #tpu.pipeline_mode<synchronous>, transform_indices = @transform_10, window_bounds = array<i64: 8, 128>}, {pipeline_mode = #tpu.pipeline_mode<synchronous>, transform_indices = @transform_11, window_bounds = array<i64: 8, 128>}, {transform_indices = @transform_12, window_bounds = array<i64: 2, 8, 256>}]} {
    %c0 = arith.constant 0 : index
    %c0_0 = arith.constant 0 : index
    %0 = vector.load %arg2[%c0, %c0_0] : memref<1x256xf32, #tpu.memory_space<vmem>>, vector<1x256xf32>
    %c0_1 = arith.constant 0 : index
    %c0_2 = arith.constant 0 : index
    %1 = vector.load %arg3[%c0_1, %c0_2] : memref<256x128xf32, #tpu.memory_space<vmem>>, vector<256x128xf32>
    %c0_3 = arith.constant 0 : index
    %c0_4 = arith.constant 0 : index
    %2 = vector.load %arg8[%c0_3, %c0_4] : memref<16x128xf32, #tpu.memory_space<vmem>>, vector<16x128xf32>
    %c0_5 = arith.constant 0 : index
    %c0_6 = arith.constant 0 : index
    %c0_7 = arith.constant 0 : index
    %3 = vector.load %arg1[%c0_5, %c0_6, %c0_7] : memref<2x2x256xf32, #tpu.memory_space<vmem>>, vector<1x2x256xf32>
    %4 = vector.shape_cast %3 : vector<1x2x256xf32> to vector<2x256xf32>
    %5 = vector.broadcast %0 : vector<1x256xf32> to vector<2x256xf32>
    %6 = arith.mulf %4, %5 : vector<2x256xf32>
    %cst = arith.constant dense<0.000000e+00> : vector<2x128xf32>
    %7 = tpu.matmul %6, %1, %cst {dimension_numbers = #tpu.dot_dimension_numbers<[1], [0], [0], [1], [0, 0, 1, 1], [], []>} : vector<2x256xf32>, vector<256x128xf32>, vector<2x128xf32> -> vector<2x128xf32>
    %c0_8 = arith.constant 0 : index
    %c0_9 = arith.constant 0 : index
    %c0_10 = arith.constant 0 : index
    %8 = vector.load %arg7[%c0_8, %c0_9, %c0_10] : memref<2x16x128xf32, #tpu.memory_space<vmem>>, vector<1x16x128xf32>
    %9 = vector.shape_cast %8 : vector<1x16x128xf32> to vector<16x128xf32>
    %10 = vector.extract_strided_slice %7 {offsets = [0, 0], sizes = [1, 128], strides = [1, 1]} : vector<2x128xf32> to vector<1x128xf32>
    %11 = vector.broadcast %10 : vector<1x128xf32> to vector<16x128xf32>
    %12 = arith.mulf %9, %11 : vector<16x128xf32>
    %13 = arith.addf %2, %12 : vector<16x128xf32>
    %c1 = arith.constant 1 : index
    %c0_11 = arith.constant 0 : index
    %c0_12 = arith.constant 0 : index
    %14 = vector.load %arg7[%c1, %c0_11, %c0_12] : memref<2x16x128xf32, #tpu.memory_space<vmem>>, vector<1x16x128xf32>
    %15 = vector.shape_cast %14 : vector<1x16x128xf32> to vector<16x128xf32>
    %16 = vector.extract_strided_slice %7 {offsets = [1, 0], sizes = [1, 128], strides = [1, 1]} : vector<2x128xf32> to vector<1x128xf32>
    %17 = vector.broadcast %16 : vector<1x128xf32> to vector<16x128xf32>
    %18 = arith.mulf %15, %17 : vector<16x128xf32>
    %19 = arith.addf %13, %18 : vector<16x128xf32>
    %c1_13 = arith.constant 1 : index
    %c0_14 = arith.constant 0 : index
    %c0_15 = arith.constant 0 : index
    %20 = vector.load %arg1[%c1_13, %c0_14, %c0_15] : memref<2x2x256xf32, #tpu.memory_space<vmem>>, vector<1x2x256xf32>
    %21 = vector.shape_cast %20 : vector<1x2x256xf32> to vector<2x256xf32>
    %22 = vector.broadcast %0 : vector<1x256xf32> to vector<2x256xf32>
    %23 = arith.mulf %21, %22 : vector<2x256xf32>
    %cst_16 = arith.constant dense<0.000000e+00> : vector<2x128xf32>
    %24 = tpu.matmul %23, %1, %cst_16 {dimension_numbers = #tpu.dot_dimension_numbers<[1], [0], [0], [1], [0, 0, 1, 1], [], []>} : vector<2x256xf32>, vector<256x128xf32>, vector<2x128xf32> -> vector<2x128xf32>
    %c0_17 = arith.constant 0 : index
    %c0_18 = arith.constant 0 : index
    %c0_19 = arith.constant 0 : index
    %25 = vector.load %arg7[%c0_17, %c0_18, %c0_19] : memref<2x16x128xf32, #tpu.memory_space<vmem>>, vector<1x16x128xf32>
    %26 = vector.shape_cast %25 : vector<1x16x128xf32> to vector<16x128xf32>
    %27 = vector.extract_strided_slice %24 {offsets = [0, 0], sizes = [1, 128], strides = [1, 1]} : vector<2x128xf32> to vector<1x128xf32>
    %28 = vector.broadcast %27 : vector<1x128xf32> to vector<16x128xf32>
    %29 = arith.mulf %26, %28 : vector<16x128xf32>
    %30 = arith.addf %2, %29 : vector<16x128xf32>
    %c1_20 = arith.constant 1 : index
    %c0_21 = arith.constant 0 : index
    %c0_22 = arith.constant 0 : index
    %31 = vector.load %arg7[%c1_20, %c0_21, %c0_22] : memref<2x16x128xf32, #tpu.memory_space<vmem>>, vector<1x16x128xf32>
    %32 = vector.shape_cast %31 : vector<1x16x128xf32> to vector<16x128xf32>
    %33 = vector.extract_strided_slice %24 {offsets = [1, 0], sizes = [1, 128], strides = [1, 1]} : vector<2x128xf32> to vector<1x128xf32>
    %34 = vector.broadcast %33 : vector<1x128xf32> to vector<16x128xf32>
    %35 = arith.mulf %32, %34 : vector<16x128xf32>
    %36 = arith.addf %30, %35 : vector<16x128xf32>
    %37 = tpu.concatenate %19, %36 in 0 : vector<16x128xf32>, vector<16x128xf32> -> vector<32x128xf32>
    %c0_23 = arith.constant 0 : index
    %c0_24 = arith.constant 0 : index
    %38 = vector.load %arg4[%c0_23, %c0_24] : memref<128x256xf32, #tpu.memory_space<vmem>>, vector<128x256xf32>
    %cst_25 = arith.constant dense<0.000000e+00> : vector<32x256xf32>
    %39 = tpu.matmul %37, %38, %cst_25 {dimension_numbers = #tpu.dot_dimension_numbers<[1], [0], [0], [1], [0, 0, 1, 1], [], []>} : vector<32x128xf32>, vector<128x256xf32>, vector<32x256xf32> -> vector<32x256xf32>
    %cst_26 = arith.constant 0.000000e+00 : f32
    %40 = vector.broadcast %cst_26 : f32 to vector<32x256xf32>
    %41 = arith.maximumf %39, %40 : vector<32x256xf32>
    %c0_27 = arith.constant 0 : index
    %c0_28 = arith.constant 0 : index
    %42 = vector.load %arg9[%c0_27, %c0_28] : memref<8x16xf32, #tpu.memory_space<vmem>>, vector<8x16xf32>
    %c0_29 = arith.constant 0 : index
    %c0_30 = arith.constant 0 : index
    %43 = vector.load %arg10[%c0_29, %c0_30] : memref<8x256xf32, #tpu.memory_space<vmem>>, vector<8x256xf32>
    %44 = vector.extract_strided_slice %41 {offsets = [0, 0], sizes = [16, 256], strides = [1, 1]} : vector<32x256xf32> to vector<16x256xf32>
    %cst_31 = arith.constant dense<0.000000e+00> : vector<8x256xf32>
    %45 = tpu.matmul %42, %44, %cst_31 {dimension_numbers = #tpu.dot_dimension_numbers<[1], [0], [0], [1], [0, 0, 1, 1], [], []>} : vector<8x16xf32>, vector<16x256xf32>, vector<8x256xf32> -> vector<8x256xf32>
    %46 = arith.addf %45, %43 : vector<8x256xf32>
    %47 = vector.extract_strided_slice %41 {offsets = [16, 0], sizes = [16, 256], strides = [1, 1]} : vector<32x256xf32> to vector<16x256xf32>
    %cst_32 = arith.constant dense<0.000000e+00> : vector<8x256xf32>
    %48 = tpu.matmul %42, %47, %cst_32 {dimension_numbers = #tpu.dot_dimension_numbers<[1], [0], [0], [1], [0, 0, 1, 1], [], []>} : vector<8x16xf32>, vector<16x256xf32>, vector<8x256xf32> -> vector<8x256xf32>
    %49 = arith.addf %48, %43 : vector<8x256xf32>
    %50 = tpu.concatenate %46, %49 in 0 : vector<8x256xf32>, vector<8x256xf32> -> vector<16x256xf32>
    %51 = vector.broadcast %0 : vector<1x256xf32> to vector<16x256xf32>
    %52 = arith.mulf %50, %51 : vector<16x256xf32>
    %c0_33 = arith.constant 0 : index
    %c0_34 = arith.constant 0 : index
    %53 = vector.load %arg5[%c0_33, %c0_34] : memref<256x128xf32, #tpu.memory_space<vmem>>, vector<256x128xf32>
    %cst_35 = arith.constant dense<0.000000e+00> : vector<16x128xf32>
    %54 = tpu.matmul %52, %53, %cst_35 {dimension_numbers = #tpu.dot_dimension_numbers<[1], [0], [0], [1], [0, 0, 1, 1], [], []>} : vector<16x256xf32>, vector<256x128xf32>, vector<16x128xf32> -> vector<16x128xf32>
    %c0_36 = arith.constant 0 : index
    %c0_37 = arith.constant 0 : index
    %55 = vector.load %arg11[%c0_36, %c0_37] : memref<8x128xf32, #tpu.memory_space<vmem>>, vector<8x128xf32>
    %c0_38 = arith.constant 0 : index
    %c0_39 = arith.constant 0 : index
    %56 = vector.load %arg12[%c0_38, %c0_39] : memref<8x128xf32, #tpu.memory_space<vmem>>, vector<8x128xf32>
    %57 = vector.extract_strided_slice %54 {offsets = [0, 0], sizes = [8, 128], strides = [1, 1]} : vector<16x128xf32> to vector<8x128xf32>
    %58 = arith.mulf %57, %55 : vector<8x128xf32>
    %59 = arith.addf %58, %56 : vector<8x128xf32>
    %60 = vector.extract_strided_slice %54 {offsets = [8, 0], sizes = [8, 128], strides = [1, 1]} : vector<16x128xf32> to vector<8x128xf32>
    %61 = arith.mulf %60, %55 : vector<8x128xf32>
    %62 = arith.addf %61, %56 : vector<8x128xf32>
    %63 = tpu.concatenate %59, %62 in 0 : vector<8x128xf32>, vector<8x128xf32> -> vector<16x128xf32>
    %c0_40 = arith.constant 0 : index
    %c0_41 = arith.constant 0 : index
    %64 = vector.load %arg6[%c0_40, %c0_41] : memref<128x256xf32, #tpu.memory_space<vmem>>, vector<128x256xf32>
    %cst_42 = arith.constant dense<0.000000e+00> : vector<16x256xf32>
    %65 = tpu.matmul %63, %64, %cst_42 {dimension_numbers = #tpu.dot_dimension_numbers<[1], [0], [0], [1], [0, 0, 1, 1], [], []>} : vector<16x128xf32>, vector<128x256xf32>, vector<16x256xf32> -> vector<16x256xf32>
    %66 = vector.extract_strided_slice %65 {offsets = [0, 0], sizes = [8, 256], strides = [1, 1]} : vector<16x256xf32> to vector<8x256xf32>
    %c0_43 = arith.constant 0 : index
    %c0_44 = arith.constant 0 : index
    %c0_45 = arith.constant 0 : index
    %67 = vector.load %arg13[%c0_43, %c0_44, %c0_45] : memref<2x8x256xf32, #tpu.memory_space<vmem>>, vector<1x8x256xf32>
    %68 = vector.shape_cast %67 : vector<1x8x256xf32> to vector<8x256xf32>
    %69 = vector.shape_cast %66 : vector<8x256xf32> to vector<1x8x256xf32>
    tpu.vector_store %arg13[%c0_43, %c0_44, %c0_45], %69 {strides = array<i32>} : memref<2x8x256xf32, #tpu.memory_space<vmem>>, vector<1x8x256xf32>,
    %70 = vector.extract_strided_slice %65 {offsets = [8, 0], sizes = [8, 256], strides = [1, 1]} : vector<16x256xf32> to vector<8x256xf32>
    %c1_46 = arith.constant 1 : index
    %c0_47 = arith.constant 0 : index
    %c0_48 = arith.constant 0 : index
    %71 = vector.load %arg13[%c1_46, %c0_47, %c0_48] : memref<2x8x256xf32, #tpu.memory_space<vmem>>, vector<1x8x256xf32>
    %72 = vector.shape_cast %71 : vector<1x8x256xf32> to vector<8x256xf32>
    %73 = vector.shape_cast %70 : vector<8x256xf32> to vector<1x8x256xf32>
    tpu.vector_store %arg13[%c1_46, %c0_47, %c0_48], %73 {strides = array<i32>} : memref<2x8x256xf32, #tpu.memory_space<vmem>>, vector<1x8x256xf32>,
    return
  }
  func.func @transform_0(%arg0: i32) -> (i32, i32, i32) {
    %c0_i32 = arith.constant 0 : i32
    %c0_i32_0 = arith.constant 0 : i32
    %c0_i32_1 = arith.constant 0 : i32
    return %arg0, %c0_i32, %c0_i32_0 : i32, i32, i32
  }
  func.func @transform_1(%arg0: i32) -> (i32, i32) {
    %c0_i32 = arith.constant 0 : i32
    %c0_i32_0 = arith.constant 0 : i32
    %c0_i32_1 = arith.constant 0 : i32
    return %c0_i32, %c0_i32_0 : i32, i32
  }
  func.func @transform_2(%arg0: i32) -> (i32, i32) {
    %c0_i32 = arith.constant 0 : i32
    %c0_i32_0 = arith.constant 0 : i32
    %c0_i32_1 = arith.constant 0 : i32
    return %c0_i32, %c0_i32_0 : i32, i32
  }
  func.func @transform_3(%arg0: i32) -> (i32, i32) {
    %c0_i32 = arith.constant 0 : i32
    %c0_i32_0 = arith.constant 0 : i32
    %c0_i32_1 = arith.constant 0 : i32
    return %c0_i32, %c0_i32_0 : i32, i32
  }
  func.func @transform_4(%arg0: i32) -> (i32, i32) {
    %c0_i32 = arith.constant 0 : i32
    %c0_i32_0 = arith.constant 0 : i32
    %c0_i32_1 = arith.constant 0 : i32
    return %c0_i32, %c0_i32_0 : i32, i32
  }
  func.func @transform_5(%arg0: i32) -> (i32, i32) {
    %c0_i32 = arith.constant 0 : i32
    %c0_i32_0 = arith.constant 0 : i32
    %c0_i32_1 = arith.constant 0 : i32
    return %c0_i32, %c0_i32_0 : i32, i32
  }
  func.func @transform_6(%arg0: i32) -> (i32, i32, i32) {
    %c0_i32 = arith.constant 0 : i32
    %c0_i32_0 = arith.constant 0 : i32
    %c0_i32_1 = arith.constant 0 : i32
    %c0_i32_2 = arith.constant 0 : i32
    return %c0_i32, %c0_i32_0, %c0_i32_1 : i32, i32, i32
  }
  func.func @transform_7(%arg0: i32) -> (i32, i32) {
    %c0_i32 = arith.constant 0 : i32
    %c0_i32_0 = arith.constant 0 : i32
    %c0_i32_1 = arith.constant 0 : i32
    return %c0_i32, %c0_i32_0 : i32, i32
  }
  func.func @transform_8(%arg0: i32) -> (i32, i32) {
    %c0_i32 = arith.constant 0 : i32
    %c0_i32_0 = arith.constant 0 : i32
    %c0_i32_1 = arith.constant 0 : i32
    return %c0_i32, %c0_i32_0 : i32, i32
  }
  func.func @transform_9(%arg0: i32) -> (i32, i32) {
    %c0_i32 = arith.constant 0 : i32
    %c0_i32_0 = arith.constant 0 : i32
    %c0_i32_1 = arith.constant 0 : i32
    return %c0_i32, %c0_i32_0 : i32, i32
  }
  func.func @transform_10(%arg0: i32) -> (i32, i32) {
    %c0_i32 = arith.constant 0 : i32
    %c0_i32_0 = arith.constant 0 : i32
    %c0_i32_1 = arith.constant 0 : i32
    return %c0_i32, %c0_i32_0 : i32, i32
  }
  func.func @transform_11(%arg0: i32) -> (i32, i32) {
    %c0_i32 = arith.constant 0 : i32
    %c0_i32_0 = arith.constant 0 : i32
    %c0_i32_1 = arith.constant 0 : i32
    return %c0_i32, %c0_i32_0 : i32, i32
  }
  func.func @transform_12(%arg0: i32) -> (i32, i32, i32) {
    %c0_i32 = arith.constant 0 : i32
    %c0_i32_0 = arith.constant 0 : i32
    %c0_i32_1 = arith.constant 0 : i32
    return %arg0, %c0_i32, %c0_i32_0 : i32, i32, i32
  }
}

module attributes {stable_mosaic.version = 11 : i64} {
  func.func @_nearest_kernel(%arg0: i32, %arg1: i32, %arg2: memref<1x8x128xf32, #tpu.memory_space<vmem>>, %arg3: memref<256x8xf32, #tpu.memory_space<vmem>>, %arg4: memref<1x1x128xi32, #tpu.memory_space<vmem>>) attributes {dimension_semantics = [#tpu.dimension_semantics<parallel>, #tpu.dimension_semantics<parallel>], iteration_bounds = array<i64: 1, 2>, scalar_prefetch = 0 : i64, scratch_operands = 0 : i64, tpu.core_type = #tpu.core_type<tc>, window_params = [{transform_indices = @transform_0, window_bounds = array<i64: 1, 8, 128>}, {pipeline_mode = #tpu.pipeline_mode<synchronous>, transform_indices = @transform_1, window_bounds = array<i64: 256, 8>}, {transform_indices = @transform_2, window_bounds = array<i64: 1, 1, 128>}]} {
    %c0 = arith.constant 0 : index
    %c0_0 = arith.constant 0 : index
    %c0_1 = arith.constant 0 : index
    %0 = vector.load %arg2[%c0, %c0_0, %c0_1] : memref<1x8x128xf32, #tpu.memory_space<vmem>>, vector<1x8x128xf32>
    %1 = vector.shape_cast %0 : vector<1x8x128xf32> to vector<8x128xf32>
    %c0_2 = arith.constant 0 : index
    %c0_3 = arith.constant 0 : index
    %2 = vector.load %arg3[%c0_2, %c0_3] : memref<256x8xf32, #tpu.memory_space<vmem>>, vector<256x8xf32>
    %cst = arith.constant dense<0.000000e+00> : vector<256x128xf32>
    %3 = tpu.matmul %2, %1, %cst {dimension_numbers = #tpu.dot_dimension_numbers<[1], [0], [0], [1], [0, 0, 1, 1], [], []>} : vector<256x8xf32>, vector<8x128xf32>, vector<256x128xf32> -> vector<256x128xf32>
    %4 = tpu.iota {dimensions = array<i32: 0>} : vector<256x128xi32>
    %c256_i32 = arith.constant 256 : i32
    %5 = vector.broadcast %c256_i32 : i32 to vector<256x128xi32>
    %6 = arith.cmpi slt, %4, %5 : vector<256x128xi32>
    %cst_4 = arith.constant 0xFF800000 : f32
    %7 = vector.broadcast %cst_4 : f32 to vector<256x128xf32>
    %8 = arith.select %6, %3, %7 : vector<256x128xi1>, vector<256x128xf32>
    %cst_5 = arith.constant dense<0xFF800000> : vector<128xf32>
    %9 = vector.multi_reduction <maximumf>, %8, %cst_5 [0] : vector<256x128xf32> to vector<128xf32>
    %10 = vector.shape_cast %9 : vector<128xf32> to vector<1x128xf32>
    %11 = vector.broadcast %10 : vector<1x128xf32> to vector<256x128xf32>
    %12 = arith.cmpf oge, %8, %11 : vector<256x128xf32>
    %c256_i32_6 = arith.constant 256 : i32
    %13 = vector.broadcast %c256_i32_6 : i32 to vector<256x128xi32>
    %14 = arith.select %12, %4, %13 : vector<256x128xi1>, vector<256x128xi32>
    %cst_7 = arith.constant dense<2147483647> : vector<128xi32>
    %15 = vector.multi_reduction <minsi>, %14, %cst_7 [0] : vector<256x128xi32> to vector<128xi32>
    %16 = vector.shape_cast %15 : vector<128xi32> to vector<1x128xi32>
    %c0_8 = arith.constant 0 : index
    %c0_9 = arith.constant 0 : index
    %c0_10 = arith.constant 0 : index
    %17 = vector.load %arg4[%c0_8, %c0_9, %c0_10] : memref<1x1x128xi32, #tpu.memory_space<vmem>>, vector<1x1x128xi32>
    %18 = vector.shape_cast %17 : vector<1x1x128xi32> to vector<1x128xi32>
    %19 = vector.shape_cast %16 : vector<1x128xi32> to vector<1x1x128xi32>
    tpu.vector_store %arg4[%c0_8, %c0_9, %c0_10], %19 {strides = array<i32>} : memref<1x1x128xi32, #tpu.memory_space<vmem>>, vector<1x1x128xi32>,
    return
  }
  func.func @transform_0(%arg0: i32, %arg1: i32) -> (i32, i32, i32) {
    %c0_i32 = arith.constant 0 : i32
    %c0_i32_0 = arith.constant 0 : i32
    return %arg0, %c0_i32, %arg1 : i32, i32, i32
  }
  func.func @transform_1(%arg0: i32, %arg1: i32) -> (i32, i32) {
    %c0_i32 = arith.constant 0 : i32
    %c0_i32_0 = arith.constant 0 : i32
    %c0_i32_1 = arith.constant 0 : i32
    return %c0_i32, %c0_i32_0 : i32, i32
  }
  func.func @transform_2(%arg0: i32, %arg1: i32) -> (i32, i32, i32) {
    %c0_i32 = arith.constant 0 : i32
    %c0_i32_0 = arith.constant 0 : i32
    return %arg0, %c0_i32, %arg1 : i32, i32, i32
  }
}

</mosaic_0001>

<llo_original>
// kernel: _lambda_.3
$region0: #{_lambda_.3}
  #allocation0 [shape = 'u32[]', space=smem, size = 0x4, offset = 0x4, fixed_abs, tag = 'smem constant byte address 0x4 - core index']
  #allocation1 [shape = 'u32[72,128]{1,0:T(1,128)}', space=vmem, size = 0x9000, scoped, tag = 'internal scratch']
  %s0 = inlined_call_operand.vmem [shape: f32[2,8,256], index: 0, kind: input, shape index: {}]
  %s1 = inlined_call_operand.vmem [shape: f32[256,8], index: 1, kind: input, shape index: {}]
  %s2 = inlined_call_operand.vmem [shape: s32[2,1,256], index: 2, kind: output, shape index: {}]
  %s3 = sld [smem:[#allocation0]]
  $region41: #{_lambda_.3} parent=0
    _
  %s5 = ssub.s32 1, %s3
  %s6 = scalar_select 0, %s5, %s3
  loop: start=0, step=1, limit=6
  $region2: #{_lambda_.3} parent=0 // loop_pre_header
    _
  $region3: #{_lambda_.3} parent=0 // loop_header
    %s8 = sphi 0, %s12
    %p9 = scmp.ge.s32.totalorder %s8, 6
    %s15 = sphi 0, %s27
    %s16 = sphi 0, %s23
    %s17 = sphi 0, %s15
    %s18 = sphi 0, %s16
    %s19 = sphi 0, %s17
    %s20 = sphi 0, %s18
    %s32 = sphi 0, %s34
    %s35 = sphi 0, %s32
    %s36 = sphi 0, %s35
    %s52 = sphi 0, %s36
    %s56 = sphi 0, %s56
    %s58 = sphi 0, %s56
    %s59 = sphi 0, %s58
    %s73 = sphi 0, %s59
    %s81 = sphi 0, %s83
    %s84 = sphi 0, %s81
    %s85 = sphi 0, %s84
    %s101 = sphi 0, %s85
  $region4: #{_lambda_.3} parent=0 // loop_header_branch
    %11 = sbr.rel (%p9) target = $region8
  $region5: #{_lambda_.3} parent=0 // loop_body
    %s13 = ssub.s32 %s8, 1
    %s14 = ssub.s32 %s8, 2
    %s21 = sadd.s32 1, %s16
    %p22 = scmp.ge.s32.totalorder %s21, 2
    %s23 = scalar_select %p22, 0, %s21
    %s24 = sadd.s32 1, %s15
    %s25 = scalar_select %p22, %s24, %s15
    %p26 = scmp.ge.s32.totalorder %s25, 2
    %s27 = scalar_select %p26, 0, %s25
    %s28 = ssub.s32 %s15, %s27
    %s29 = ssub.s32 %s16, %s23
    %s30 = sor.u32 %s28, %s29
    %p31 = scmp.eq.s32.totalorder %s30, 0
    %s33 = sadd.s32 %s32, 1
    %s34 = scalar_select %p31, %s32, %s33
    %p37 = pneg %p31
    %p38 = scmp.eq.s32.totalorder %s8, 3
    %p39 = por %p37, %p38
    %p40 = scmp.ne.s32.totalorder %s32, %s35
    %p41 = scmp.eq.s32.totalorder %s8, 0
    %p42 = por %p40, %p41
    %p43 = scmp.ne.s32.totalorder %s32, %s35
    %p44 = scmp.eq.s32.totalorder %s13, 3
    %p45 = por %p43, %p44
    %p46 = scmp.ne.s32.totalorder %s35, %s36
    %p47 = scmp.eq.s32.totalorder %s13, 0
    %p48 = por %p46, %p47
    %p49 = scmp.ne.s32.totalorder %s35, %s36
    %p50 = scmp.eq.s32.totalorder %s14, 3
    %p51 = por %p49, %p50
    %p53 = scmp.ne.s32.totalorder %s36, %s52
    %p54 = scmp.eq.s32.totalorder %s14, 0
    %p55 = por %p53, %p54
    %s57 = sadd.s32 %s56, 1
    %p60 = scmp.eq.s32.totalorder %s8, 3
    %p61 = scmp.ne.s32.totalorder %s56, %s58
    %p62 = scmp.eq.s32.totalorder %s8, 0
    %p63 = por %p61, %p62
    %p64 = scmp.ne.s32.totalorder %s56, %s58
    %p65 = scmp.eq.s32.totalorder %s13, 3
    %p66 = por %p64, %p65
    %p67 = scmp.ne.s32.totalorder %s58, %s59
    %p68 = scmp.eq.s32.totalorder %s13, 0
    %p69 = por %p67, %p68
    %p70 = scmp.ne.s32.totalorder %s58, %s59
    %p71 = scmp.eq.s32.totalorder %s14, 3
    %p72 = por %p70, %p71
    %p74 = scmp.ne.s32.totalorder %s59, %s73
    %p75 = scmp.eq.s32.totalorder %s14, 0
    %p76 = por %p74, %p75
    %s77 = ssub.s32 %s15, %s27
    %s78 = ssub.s32 %s16, %s23
    %s79 = sor.u32 %s77, %s78
    %p80 = scmp.eq.s32.totalorder %s79, 0
    %s82 = sadd.s32 %s81, 1
    %s83 = scalar_select %p80, %s81, %s82
    %p86 = pneg %p80
    %p87 = scmp.eq.s32.totalorder %s8, 3
    %p88 = por %p86, %p87
    %p89 = scmp.ne.s32.totalorder %s81, %s84
    %p90 = scmp.eq.s32.totalorder %s8, 0
    %p91 = por %p89, %p90
    %p92 = scmp.ne.s32.totalorder %s81, %s84
    %p93 = scmp.eq.s32.totalorder %s13, 3
    %p94 = por %p92, %p93
    %p95 = scmp.ne.s32.totalorder %s84, %s85
    %p96 = scmp.eq.s32.totalorder %s13, 0
    %p97 = por %p95, %p96
    %p98 = scmp.ne.s32.totalorder %s84, %s85
    %p99 = scmp.eq.s32.totalorder %s14, 3
    %p100 = por %p98, %p99
    %p102 = scmp.ne.s32.totalorder %s85, %s101
    %p103 = scmp.eq.s32.totalorder %s14, 0
    %p104 = por %p102, %p103
    %p105 = scmp.le.s32.totalorder 1, %s8
    %p106 = scmp.lt.s32.totalorder %s8, 5
    %p107 = pnand %p105, %p106
    %p108 = pneg %p107
    // Predicated region
    $region9: #{_lambda_.3} parent=5 // pred_check
      _
    $region10: #{_lambda_.3} parent=5 // pred_check_branch
      %110 = sbr.rel (%p107) target = $region12
    $region11: #{_lambda_.3} parent=5 // pred_region
      %s111 = ssub.s32 %s8, 1
      // Predicated region
      $region13: #{_lambda_.3} parent=11 // pred_check
        %p112 = pneg %p69
      $region14: #{_lambda_.3} parent=11 // pred_check_branch
        %114 = sbr.rel (%p112) target = $region16
      $region15: #{_lambda_.3} parent=11 // pred_region
        _
      $region16: #{_lambda_.3} parent=11 // pred_fallthru
        _
    $region12: #{_lambda_.3} parent=5 // pred_fallthru
      _
    %p115 = scmp.lt.s32.totalorder %s8, 4
    // Predicated region
    $region17: #{_lambda_.3} parent=5 // pred_check
      %p116 = pneg %p115
    $region18: #{_lambda_.3} parent=5 // pred_check_branch
      %118 = sbr.rel (%p116) target = $region20
    $region19: #{_lambda_.3} parent=5 // pred_region
      // Predicated region
      $region21: #{_lambda_.3} parent=19 // pred_check
        %p119 = pneg %p42
      $region22: #{_lambda_.3} parent=19 // pred_check_branch
        %121 = sbr.rel (%p119) target = $region24
      $region23: #{_lambda_.3} parent=19 // pred_region
        %p122 = scmp.lt.s32.totalorder %s15, 1
        %s123 = scalar_select %p122, %s15, 1
        %p124 = scmp.lt.s32.totalorder %s16, 1
        %s125 = scalar_select %p124, %s16, 1
        %s126 = smul.addr %s123, 2
        %s127 = sadd.s32 %s125, %s126
        %s128 = smul.addr %s127, 8
        %s129 = scalar_lea.vmem %s0, %s128
      $region24: #{_lambda_.3} parent=19 // pred_fallthru
        _
    $region20: #{_lambda_.3} parent=5 // pred_fallthru
      _
    %p130 = scmp.le.s32.totalorder 1, %s8
    %p131 = scmp.lt.s32.totalorder %s8, 5
    %p132 = pnand %p130, %p131
    %p133 = pneg %p132
    // Predicated region
    $region25: #{_lambda_.3} parent=5 // pred_check
      _
    $region26: #{_lambda_.3} parent=5 // pred_check_branch
      %135 = sbr.rel (%p132) target = $region28
    $region27: #{_lambda_.3} parent=5 // pred_region
      %s136 = ssub.s32 %s8, 1
      %p137 = scmp.lt.s32.totalorder %s17, 1
      %s138 = scalar_select %p137, %s17, 1
      %p139 = scmp.lt.s32.totalorder %s18, 1
      %s140 = scalar_select %p139, %s18, 1
      %s141 = smul.addr %s138, 2
      %s142 = sadd.s32 %s140, %s141
      %s143 = smul.addr %s142, 8
      %s144 = scalar_lea.vmem %s0, %s143
      %p145 = pneg %p48
      %p146 = pneg %p45
      %p147 = pneg %p69
      %p148 = pneg %p66
      %p149 = pneg %p97
      %p150 = pneg %p94
      %p151 = scmp.lt.s32.totalorder %s17, 1
      %s152 = scalar_select %p151, %s17, 1
      %p153 = scmp.lt.s32.totalorder %s18, 1
      %s154 = scalar_select %p153, %s18, 1
      %s155 = smul.addr %s152, 2
      %s156 = sadd.s32 %s154, %s155
      %s157 = scalar_lea.vmem %s2, %s156
      %p158 = scmp.lt.s32.totalorder %s17, 1
      %s159 = scalar_select %p158, %s17, 1
      %p160 = scmp.lt.s32.totalorder %s18, 1
      %s161 = scalar_select %p160, %s18, 1
      %s162 = smul.addr %s159, 2
      %s163 = sadd.s32 %s161, %s162
      %s164 = smul.addr %s163, 8
      %s165 = scalar_lea.vmem %s0, %s164
      %p166 = scmp.lt.s32.totalorder %s17, 1
      %s167 = scalar_select %p166, %s17, 1
      %p168 = scmp.lt.s32.totalorder %s18, 1
      %s169 = scalar_select %p168, %s18, 1
      %s170 = smul.addr %s167, 2
      %s171 = sadd.s32 %s169, %s170
      %s172 = scalar_lea.vmem %s2, %s171
      %v173 = vld [vmem:[%s165] sm:$0xff]
      %v174 = vld [vmem:[%s1] sm:$0xff]
      %v175 = vld [vmem:[%s1 + $0x8] sm:$0xff]
      %v176 = vld [vmem:[%s1 + $0x10] sm:$0xff]
      %v177 = vld [vmem:[%s1 + $0x18] sm:$0xff]
      %v178 = vld [vmem:[%s1 + $0x20] sm:$0xff]
      %v179 = vld [vmem:[%s1 + $0x28] sm:$0xff]
      %v180 = vld [vmem:[%s1 + $0x30] sm:$0xff]
      %v181 = vld [vmem:[%s1 + $0x38] sm:$0xff]
      %v182 = vld [vmem:[%s1 + $0x40] sm:$0xff]
      %v183 = vld [vmem:[%s1 + $0x48] sm:$0xff]
      %v184 = vld [vmem:[%s1 + $0x50] sm:$0xff]
      %v185 = vld [vmem:[%s1 + $0x58] sm:$0xff]
      %v186 = vld [vmem:[%s1 + $0x60] sm:$0xff]
      %v187 = vld [vmem:[%s1 + $0x68] sm:$0xff]
      %v188 = vld [vmem:[%s1 + $0x70] sm:$0xff]
      %v189 = vld [vmem:[%s1 + $0x78] sm:$0xff]
      %v190 = vld [vmem:[%s1 + $0x80] sm:$0xff]
      %v191 = vld [vmem:[%s1 + $0x88] sm:$0xff]
      %v192 = vld [vmem:[%s1 + $0x90] sm:$0xff]
      %v193 = vld [vmem:[%s1 + $0x98] sm:$0xff]
      %v194 = vld [vmem:[%s1 + $0xa0] sm:$0xff]
      %v195 = vld [vmem:[%s1 + $0xa8] sm:$0xff]
      %v196 = vld [vmem:[%s1 + $0xb0] sm:$0xff]
      %v197 = vld [vmem:[%s1 + $0xb8] sm:$0xff]
      %v198 = vld [vmem:[%s1 + $0xc0] sm:$0xff]
      %v199 = vld [vmem:[%s1 + $0xc8] sm:$0xff]
      %v200 = vld [vmem:[%s1 + $0xd0] sm:$0xff]
      %v201 = vld [vmem:[%s1 + $0xd8] sm:$0xff]
      %v202 = vld [vmem:[%s1 + $0xe0] sm:$0xff]
      %v203 = vld [vmem:[%s1 + $0xe8] sm:$0xff]
      %v204 = vld [vmem:[%s1 + $0xf0] sm:$0xff]
      %v205 = vld [vmem:[%s1 + $0xf8] sm:$0xff]
      %vm206 = vcmask 64512
      %v208 = vsel %vm206, %v174, 0
      %v211 = vsel %vm206, %v175, 0
      %v214 = vsel %vm206, %v176, 0
      %v217 = vsel %vm206, %v177, 0
      %v220 = vsel %vm206, %v178, 0
      %v223 = vsel %vm206, %v179, 0
      %v226 = vsel %vm206, %v180, 0
      %v229 = vsel %vm206, %v181, 0
      %v232 = vsel %vm206, %v182, 0
      %v235 = vsel %vm206, %v183, 0
      %v238 = vsel %vm206, %v184, 0
      %v241 = vsel %vm206, %v185, 0
      %v244 = vsel %vm206, %v186, 0
      %v247 = vsel %vm206, %v187, 0
      %v250 = vsel %vm206, %v188, 0
      %v253 = vsel %vm206, %v189, 0
      %v256 = vsel %vm206, %v190, 0
      %v259 = vsel %vm206, %v191, 0
      %v262 = vsel %vm206, %v192, 0
      %v265 = vsel %vm206, %v193, 0
      %v268 = vsel %vm206, %v194, 0
      %v271 = vsel %vm206, %v195, 0
      %v274 = vsel %vm206, %v196, 0
      %v277 = vsel %vm206, %v197, 0
      %v280 = vsel %vm206, %v198, 0
      %v283 = vsel %vm206, %v199, 0
      %v286 = vsel %vm206, %v200, 0
      %v289 = vsel %vm206, %v201, 0
      %v292 = vsel %vm206, %v202, 0
      %v295 = vsel %vm206, %v203, 0
      %v298 = vsel %vm206, %v204, 0
      %v301 = vsel %vm206, %v205, 0
      %303 = vmatpush.msra.mxu0 0.0
      %304 = vmatpush.msra.mxu0 0.0
      %305 = vmatpush.msra.mxu0 0.0
      %306 = vmatpush.msra.mxu0 0.0
      %307 = vmatpush.msra.mxu0 0.0
      %308 = vmatpush.msra.mxu0 0.0
      %309 = vmatpush.msra.mxu0 0.0
      %310 = vmatpush.msra.mxu0 0.0
      %311 = vmatpush.msra.mxu0 0.0
      %312 = vmatpush.msra.mxu0 0.0
      %313 = vmatpush.msra.mxu0 0.0
      %314 = vmatpush.msra.mxu0 0.0
      %315 = vmatpush.msra.mxu0 0.0
      %316 = vmatpush.msra.mxu0 0.0
      %317 = vmatpush.msra.mxu0 0.0
      %318 = vmatpush.msra.mxu0 %v173
      %319 = vmatmul.f32.gmra.mxu0 %v208
      %v320 = vpop.f32.mrf.mxu0
      %v321 = vadd.f32 0.0, %v320
      %322 = vmatmul.f32.gmra.mxu0 %v211
      %v323 = vpop.f32.mrf.mxu0
      %v324 = vadd.f32 0.0, %v323
      %325 = vmatmul.f32.gmra.mxu0 %v214
      %v326 = vpop.f32.mrf.mxu0
      %v327 = vadd.f32 0.0, %v326
      %328 = vmatmul.f32.gmra.mxu0 %v217
      %v329 = vpop.f32.mrf.mxu0
      %v330 = vadd.f32 0.0, %v329
      %331 = vmatmul.f32.gmra.mxu0 %v220
      %v332 = vpop.f32.mrf.mxu0
      %v333 = vadd.f32 0.0, %v332
      %334 = vmatmul.f32.gmra.mxu0 %v223
      %v335 = vpop.f32.mrf.mxu0
      %v336 = vadd.f32 0.0, %v335
      %337 = vmatmul.f32.gmra.mxu0 %v226
      %v338 = vpop.f32.mrf.mxu0
      %v339 = vadd.f32 0.0, %v338
      %340 = vmatmul.f32.gmra.mxu0 %v229
      %v341 = vpop.f32.mrf.mxu0
      %v342 = vadd.f32 0.0, %v341
      %343 = vmatmul.f32.gmra.mxu0 %v232
      %v344 = vpop.f32.mrf.mxu0
      %v345 = vadd.f32 0.0, %v344
      %346 = vmatmul.f32.gmra.mxu0 %v235
      %v347 = vpop.f32.mrf.mxu0
      %v348 = vadd.f32 0.0, %v347
      %349 = vmatmul.f32.gmra.mxu0 %v238
      %v350 = vpop.f32.mrf.mxu0
      %v351 = vadd.f32 0.0, %v350
      %352 = vmatmul.f32.gmra.mxu0 %v241
      %v353 = vpop.f32.mrf.mxu0
      %v354 = vadd.f32 0.0, %v353
      %355 = vmatmul.f32.gmra.mxu0 %v244
      %v356 = vpop.f32.mrf.mxu0
      %v357 = vadd.f32 0.0, %v356
      %358 = vmatmul.f32.gmra.mxu0 %v247
      %v359 = vpop.f32.mrf.mxu0
      %v360 = vadd.f32 0.0, %v359
      %361 = vmatmul.f32.gmra.mxu0 %v250
      %v362 = vpop.f32.mrf.mxu0
      %v363 = vadd.f32 0.0, %v362
      %364 = vmatmul.f32.gmra.mxu0 %v253
      %v365 = vpop.f32.mrf.mxu0
      %v366 = vadd.f32 0.0, %v365
      %367 = vmatmul.f32.gmra.mxu0 %v256
      %v368 = vpop.f32.mrf.mxu0
      %v369 = vadd.f32 0.0, %v368
      %370 = vmatmul.f32.gmra.mxu0 %v259
      %v371 = vpop.f32.mrf.mxu0
      %v372 = vadd.f32 0.0, %v371
      %373 = vmatmul.f32.gmra.mxu0 %v262
      %v374 = vpop.f32.mrf.mxu0
      %v375 = vadd.f32 0.0, %v374
      %376 = vmatmul.f32.gmra.mxu0 %v265
      %v377 = vpop.f32.mrf.mxu0
      %v378 = vadd.f32 0.0, %v377
      %379 = vmatmul.f32.gmra.mxu0 %v268
      %v380 = vpop.f32.mrf.mxu0
      %v381 = vadd.f32 0.0, %v380
      %382 = vmatmul.f32.gmra.mxu0 %v271
      %v383 = vpop.f32.mrf.mxu0
      %v384 = vadd.f32 0.0, %v383
      %385 = vmatmul.f32.gmra.mxu0 %v274
      %v386 = vpop.f32.mrf.mxu0
      %v387 = vadd.f32 0.0, %v386
      %388 = vmatmul.f32.gmra.mxu0 %v277
      %v389 = vpop.f32.mrf.mxu0
      %v390 = vadd.f32 0.0, %v389
      %391 = vmatmul.f32.gmra.mxu0 %v280
      %v392 = vpop.f32.mrf.mxu0
      %v393 = vadd.f32 0.0, %v392
      %394 = vmatmul.f32.gmra.mxu0 %v283
      %v395 = vpop.f32.mrf.mxu0
      %v396 = vadd.f32 0.0, %v395
      %397 = vmatmul.f32.gmra.mxu0 %v286
      %v398 = vpop.f32.mrf.mxu0
      %v399 = vadd.f32 0.0, %v398
      %400 = vmatmul.f32.gmra.mxu0 %v289
      %v401 = vpop.f32.mrf.mxu0
      %v402 = vadd.f32 0.0, %v401
      %403 = vmatmul.f32.gmra.mxu0 %v292
      %v404 = vpop.f32.mrf.mxu0
      %v405 = vadd.f32 0.0, %v404
      %406 = vmatmul.f32.gmra.mxu0 %v295
      %v407 = vpop.f32.mrf.mxu0
      %v408 = vadd.f32 0.0, %v407
      %409 = vmatmul.f32.gmra.mxu0 %v298
      %v410 = vpop.f32.mrf.mxu0
      %v411 = vadd.f32 0.0, %v410
      %412 = vmatmul.f32.gmra.mxu0 %v301
      %v413 = vpop.f32.mrf.mxu0
      %v414 = vadd.f32 0.0, %v413
      %415 = vdwg.mxu0
      %v416 = vlaneseq
      %v417 = vshrl.u32 %v416, 7
      %v418 = vadd.s32 %v417, 8
      %v419 = vadd.s32 %v417, 16
      %v420 = vadd.s32 %v417, 24
      %v421 = vadd.s32 %v417, 32
      %v422 = vadd.s32 %v417, 40
      %v423 = vadd.s32 %v417, 48
      %v424 = vadd.s32 %v417, 56
      %v425 = vadd.s32 %v417, 64
      %v426 = vadd.s32 %v417, 72
      %v427 = vadd.s32 %v417, 80
      %v428 = vadd.s32 %v417, 88
      %v429 = vadd.s32 %v417, 96
      %v430 = vadd.s32 %v417, 104
      %v431 = vadd.s32 %v417, 112
      %v432 = vadd.s32 %v417, 120
      %v433 = vadd.s32 %v417, 128
      %v434 = vadd.s32 %v417, 136
      %v435 = vadd.s32 %v417, 144
      %v436 = vadd.s32 %v417, 152
      %v437 = vadd.s32 %v417, 160
      %v438 = vadd.s32 %v417, 168
      %v439 = vadd.s32 %v417, 176
      %v440 = vadd.s32 %v417, 184
      %v441 = vadd.s32 %v417, 192
      %v442 = vadd.s32 %v417, 200
      %v443 = vadd.s32 %v417, 208
      %v444 = vadd.s32 %v417, 216
      %v445 = vadd.s32 %v417, 224
      %v446 = vadd.s32 %v417, 232
      %v447 = vadd.s32 %v417, 240
      %v448 = vadd.s32 %v417, 248
      %vm449 = vcmp.lt.s32.totalorder %v417, 256
      %vm450 = vcmp.lt.s32.totalorder %v418, 256
      %vm451 = vcmp.lt.s32.totalorder %v419, 256
      %vm452 = vcmp.lt.s32.totalorder %v420, 256
      %vm453 = vcmp.lt.s32.totalorder %v421, 256
      %vm454 = vcmp.lt.s32.totalorder %v422, 256
      %vm455 = vcmp.lt.s32.totalorder %v423, 256
      %vm456 = vcmp.lt.s32.totalorder %v424, 256
      %vm457 = vcmp.lt.s32.totalorder %v425, 256
      %vm458 = vcmp.lt.s32.totalorder %v426, 256
      %vm459 = vcmp.lt.s32.totalorder %v427, 256
      %vm460 = vcmp.lt.s32.totalorder %v428, 256
      %vm461 = vcmp.lt.s32.totalorder %v429, 256
      %vm462 = vcmp.lt.s32.totalorder %v430, 256
      %vm463 = vcmp.lt.s32.totalorder %v431, 256
      %vm464 = vcmp.lt.s32.totalorder %v432, 256
      %vm465 = vcmp.lt.s32.totalorder %v433, 256
      %vm466 = vcmp.lt.s32.totalorder %v434, 256
      %vm467 = vcmp.lt.s32.totalorder %v435, 256
      %vm468 = vcmp.lt.s32.totalorder %v436, 256
      %vm469 = vcmp.lt.s32.totalorder %v437, 256
      %vm470 = vcmp.lt.s32.totalorder %v438, 256
      %vm471 = vcmp.lt.s32.totalorder %v439, 256
      %vm472 = vcmp.lt.s32.totalorder %v440, 256
      %vm473 = vcmp.lt.s32.totalorder %v441, 256
      %vm474 = vcmp.lt.s32.totalorder %v442, 256
      %vm475 = vcmp.lt.s32.totalorder %v443, 256
      %vm476 = vcmp.lt.s32.totalorder %v444, 256
      %vm477 = vcmp.lt.s32.totalorder %v445, 256
      %vm478 = vcmp.lt.s32.totalorder %v446, 256
      %vm479 = vcmp.lt.s32.totalorder %v447, 256
      %vm480 = vcmp.lt.s32.totalorder %v448, 256
      %v481 = vsel %vm449, %v321, -inf
      %v482 = vsel %vm450, %v324, -inf
      %v483 = vsel %vm451, %v327, -inf
      %v484 = vsel %vm452, %v330, -inf
      %v485 = vsel %vm453, %v333, -inf
      %v486 = vsel %vm454, %v336, -inf
      %v487 = vsel %vm455, %v339, -inf
      %v488 = vsel %vm456, %v342, -inf
      %v489 = vsel %vm457, %v345, -inf
      %v490 = vsel %vm458, %v348, -inf
      %v491 = vsel %vm459, %v351, -inf
      %v492 = vsel %vm460, %v354, -inf
      %v493 = vsel %vm461, %v357, -inf
      %v494 = vsel %vm462, %v360, -inf
      %v495 = vsel %vm463, %v363, -inf
      %v496 = vsel %vm464, %v366, -inf
      %v497 = vsel %vm465, %v369, -inf
      %v498 = vsel %vm466, %v372, -inf
      %v499 = vsel %vm467, %v375, -inf
      %v500 = vsel %vm468, %v378, -inf
      %v501 = vsel %vm469, %v381, -inf
      %v502 = vsel %vm470, %v384, -inf
      %v503 = vsel %vm471, %v387, -inf
      %v504 = vsel %vm472, %v390, -inf
      %v505 = vsel %vm473, %v393, -inf
      %v506 = vsel %vm474, %v396, -inf
      %v507 = vsel %vm475, %v399, -inf
      %v508 = vsel %vm476, %v402, -inf
      %v509 = vsel %vm477, %v405, -inf
      %v510 = vsel %vm478, %v408, -inf
      %v511 = vsel %vm479, %v411, -inf
      %v512 = vsel %vm480, %v414, -inf
      %v513 = vmax.f32 %v481, %v485
      %v514 = vmax.f32 %v482, %v486
      %v515 = vmax.f32 %v483, %v487
      %v516 = vmax.f32 %v484, %v488
      %v517 = vmax.f32 %v513, %v489
      %v518 = vmax.f32 %v514, %v490
      %v519 = vmax.f32 %v515, %v491
      %v520 = vmax.f32 %v516, %v492
      %v521 = vmax.f32 %v517, %v493
      %v522 = vmax.f32 %v518, %v494
      %v523 = vmax.f32 %v519, %v495
      %v524 = vmax.f32 %v520, %v496
      %v525 = vmax.f32 %v521, %v497
      %v526 = vmax.f32 %v522, %v498
      %v527 = vmax.f32 %v523, %v499
      %v528 = vmax.f32 %v524, %v500
      %v529 = vmax.f32 %v525, %v501
      %v530 = vmax.f32 %v526, %v502
      %v531 = vmax.f32 %v527, %v503
      %v532 = vmax.f32 %v528, %v504
      %v533 = vmax.f32 %v529, %v505
      %v534 = vmax.f32 %v530, %v506
      %v535 = vmax.f32 %v531, %v507
      %v536 = vmax.f32 %v532, %v508
      %v537 = vmax.f32 %v533, %v509
      %v538 = vmax.f32 %v534, %v510
      %v539 = vmax.f32 %v535, %v511
      %v540 = vmax.f32 %v536, %v512
      %v541 = vmax.f32 %v537, %v538
      %v542 = vmax.f32 %v539, %v540
      %v543 = vmax.f32 %v541, %v542
      %v544 = vrot.slane %v543, 4
      %v545 = vmax.f32 %v543, %v544
      %v546 = vrot.slane %v545, 2
      %v547 = vmax.f32 %v545, %v546
      %v548 = vrot.slane %v547, 1
      %v549 = vmax.f32 %v547, %v548
      %vm550 = vcmp.ge.f32.partialorder %v481, %v549
      %vm551 = vcmp.ge.f32.partialorder %v482, %v549
      %vm552 = vcmp.ge.f32.partialorder %v483, %v549
      %vm553 = vcmp.ge.f32.partialorder %v484, %v549
      %vm554 = vcmp.ge.f32.partialorder %v485, %v549
      %vm555 = vcmp.ge.f32.partialorder %v486, %v549
      %vm556 = vcmp.ge.f32.partialorder %v487, %v549
      %vm557 = vcmp.ge.f32.partialorder %v488, %v549
      %vm558 = vcmp.ge.f32.partialorder %v489, %v549
      %vm559 = vcmp.ge.f32.partialorder %v490, %v549
      %vm560 = vcmp.ge.f32.partialorder %v491, %v549
      %vm561 = vcmp.ge.f32.partialorder %v492, %v549
      %vm562 = vcmp.ge.f32.partialorder %v493, %v549
      %vm563 = vcmp.ge.f32.partialorder %v494, %v549
      %vm564 = vcmp.ge.f32.partialorder %v495, %v549
      %vm565 = vcmp.ge.f32.partialorder %v496, %v549
      %vm566 = vcmp.ge.f32.partialorder %v497, %v549
      %vm567 = vcmp.ge.f32.partialorder %v498, %v549
      %vm568 = vcmp.ge.f32.partialorder %v499, %v549
      %vm569 = vcmp.ge.f32.partialorder %v500, %v549
      %vm570 = vcmp.ge.f32.partialorder %v501, %v549
      %vm571 = vcmp.ge.f32.partialorder %v502, %v549
      %vm572 = vcmp.ge.f32.partialorder %v503, %v549
      %vm573 = vcmp.ge.f32.partialorder %v504, %v549
      %vm574 = vcmp.ge.f32.partialorder %v505, %v549
      %vm575 = vcmp.ge.f32.partialorder %v506, %v549
      %vm576 = vcmp.ge.f32.partialorder %v507, %v549
      %vm577 = vcmp.ge.f32.partialorder %v508, %v549
      %vm578 = vcmp.ge.f32.partialorder %v509, %v549
      %vm579 = vcmp.ge.f32.partialorder %v510, %v549
      %vm580 = vcmp.ge.f32.partialorder %v511, %v549
      %vm581 = vcmp.ge.f32.partialorder %v512, %v549
      %v582 = vsel %vm550, %v417, 256
      %v583 = vsel %vm551, %v418, 256
      %v584 = vsel %vm552, %v419, 256
      %v585 = vsel %vm553, %v420, 256
      %v586 = vsel %vm554, %v421, 256
      %v587 = vsel %vm555, %v422, 256
      %v588 = vsel %vm556, %v423, 256
      %v589 = vsel %vm557, %v424, 256
      %v590 = vsel %vm558, %v425, 256
      %v591 = vsel %vm559, %v426, 256
      %v592 = vsel %vm560, %v427, 256
      %v593 = vsel %vm561, %v428, 256
      %v594 = vsel %vm562, %v429, 256
      %v595 = vsel %vm563, %v430, 256
      %v596 = vsel %vm564, %v431, 256
      %v597 = vsel %vm565, %v432, 256
      %v598 = vsel %vm566, %v433, 256
      %v599 = vsel %vm567, %v434, 256
      %v600 = vsel %vm568, %v435, 256
      %v601 = vsel %vm569, %v436, 256
      %v602 = vsel %vm570, %v437, 256
      %v603 = vsel %vm571, %v438, 256
      %v604 = vsel %vm572, %v439, 256
      %v605 = vsel %vm573, %v440, 256
      %v606 = vsel %vm574, %v441, 256
      %v607 = vsel %vm575, %v442, 256
      %v608 = vsel %vm576, %v443, 256
      %v609 = vsel %vm577, %v444, 256
      %v610 = vsel %vm578, %v445, 256
      %v611 = vsel %vm579, %v446, 256
      %v612 = vsel %vm580, %v447, 256
      %v613 = vsel %vm581, %v448, 256
      %vm614 = vcmp.lt.s32.totalorder %v582, %v586
      %v615 = vsel %vm614, %v582, %v586
      %vm616 = vcmp.lt.s32.totalorder %v583, %v587
      %v617 = vsel %vm616, %v583, %v587
      %vm618 = vcmp.lt.s32.totalorder %v584, %v588
      %v619 = vsel %vm618, %v584, %v588
      %vm620 = vcmp.lt.s32.totalorder %v585, %v589
      %v621 = vsel %vm620, %v585, %v589
      %vm622 = vcmp.lt.s32.totalorder %v615, %v590
      %v623 = vsel %vm622, %v615, %v590
      %vm624 = vcmp.lt.s32.totalorder %v617, %v591
      %v625 = vsel %vm624, %v617, %v591
      %vm626 = vcmp.lt.s32.totalorder %v619, %v592
      %v627 = vsel %vm626, %v619, %v592
      %vm628 = vcmp.lt.s32.totalorder %v621, %v593
      %v629 = vsel %vm628, %v621, %v593
      %vm630 = vcmp.lt.s32.totalorder %v623, %v594
      %v631 = vsel %vm630, %v623, %v594
      %vm632 = vcmp.lt.s32.totalorder %v625, %v595
      %v633 = vsel %vm632, %v625, %v595
      %vm634 = vcmp.lt.s32.totalorder %v627, %v596
      %v635 = vsel %vm634, %v627, %v596
      %vm636 = vcmp.lt.s32.totalorder %v629, %v597
      %v637 = vsel %vm636, %v629, %v597
      %vm638 = vcmp.lt.s32.totalorder %v631, %v598
      %v639 = vsel %vm638, %v631, %v598
      %vm640 = vcmp.lt.s32.totalorder %v633, %v599
      %v641 = vsel %vm640, %v633, %v599
      %vm642 = vcmp.lt.s32.totalorder %v635, %v600
      %v643 = vsel %vm642, %v635, %v600
      %vm644 = vcmp.lt.s32.totalorder %v637, %v601
      %v645 = vsel %vm644, %v637, %v601
      %vm646 = vcmp.lt.s32.totalorder %v639, %v602
      %v647 = vsel %vm646, %v639, %v602
      %vm648 = vcmp.lt.s32.totalorder %v641, %v603
      %v649 = vsel %vm648, %v641, %v603
      %vm650 = vcmp.lt.s32.totalorder %v643, %v604
      %v651 = vsel %vm650, %v643, %v604
      %vm652 = vcmp.lt.s32.totalorder %v645, %v605
      %v653 = vsel %vm652, %v645, %v605
      %vm654 = vcmp.lt.s32.totalorder %v647, %v606
      %v655 = vsel %vm654, %v647, %v606
      %vm656 = vcmp.lt.s32.totalorder %v649, %v607
      %v657 = vsel %vm656, %v649, %v607
      %vm658 = vcmp.lt.s32.totalorder %v651, %v608
      %v659 = vsel %vm658, %v651, %v608
      %vm660 = vcmp.lt.s32.totalorder %v653, %v609
      %v661 = vsel %vm660, %v653, %v609
      %vm662 = vcmp.lt.s32.totalorder %v655, %v610
      %v663 = vsel %vm662, %v655, %v610
      %vm664 = vcmp.lt.s32.totalorder %v657, %v611
      %v665 = vsel %vm664, %v657, %v611
      %vm666 = vcmp.lt.s32.totalorder %v659, %v612
      %v667 = vsel %vm666, %v659, %v612
      %vm668 = vcmp.lt.s32.totalorder %v661, %v613
      %v669 = vsel %vm668, %v661, %v613
      %vm670 = vcmp.lt.s32.totalorder %v663, %v665
      %v671 = vsel %vm670, %v663, %v665
      %vm672 = vcmp.lt.s32.totalorder %v667, %v669
      %v673 = vsel %vm672, %v667, %v669
      %vm674 = vcmp.lt.s32.totalorder %v671, %v673
      %v675 = vsel %vm674, %v671, %v673
      %v676 = vrot.slane %v675, 4
      %vm677 = vcmp.lt.s32.totalorder %v675, %v676
      %v678 = vsel %vm677, %v675, %v676
      %v679 = vrot.slane %v678, 2
      %vm680 = vcmp.lt.s32.totalorder %v678, %v679
      %v681 = vsel %vm680, %v678, %v679
      %v682 = vrot.slane %v681, 1
      %vm683 = vcmp.lt.s32.totalorder %v681, %v682
      %v684 = vsel %vm683, %v681, %v682
      %685 = vst [vmem:[%s172] sm:$0x1] %v684
      %p686 = scmp.lt.s32.totalorder %s17, 1
      %s687 = scalar_select %p686, %s17, 1
      %p688 = scmp.lt.s32.totalorder %s18, 1
      %s689 = scalar_select %p688, %s18, 1
      %s690 = smul.addr %s687, 2
      %s691 = sadd.s32 %s689, %s690
      %s692 = scalar_lea.vmem %s2, %s691
      // Predicated region
      $region29: #{_lambda_.3} parent=27 // pred_check
        %p693 = pneg %p94
      $region30: #{_lambda_.3} parent=27 // pred_check_branch
        %695 = sbr.rel (%p693) target = $region32
      $region31: #{_lambda_.3} parent=27 // pred_region
        _
      $region32: #{_lambda_.3} parent=27 // pred_fallthru
        _
    $region28: #{_lambda_.3} parent=5 // pred_fallthru
      _
    %p696 = scmp.le.s32.totalorder 2, %s8
    // Predicated region
    $region33: #{_lambda_.3} parent=5 // pred_check
      %p697 = pneg %p696
    $region34: #{_lambda_.3} parent=5 // pred_check_branch
      %699 = sbr.rel (%p697) target = $region36
    $region35: #{_lambda_.3} parent=5 // pred_region
      %s700 = ssub.s32 %s8, 2
      // Predicated region
      $region37: #{_lambda_.3} parent=35 // pred_check
        %p701 = pneg %p100
      $region38: #{_lambda_.3} parent=35 // pred_check_branch
        %703 = sbr.rel (%p701) target = $region40
      $region39: #{_lambda_.3} parent=35 // pred_region
        %p704 = scmp.lt.s32.totalorder %s19, 1
        %s705 = scalar_select %p704, %s19, 1
        %p706 = scmp.lt.s32.totalorder %s20, 1
        %s707 = scalar_select %p706, %s20, 1
        %s708 = smul.addr %s705, 2
        %s709 = sadd.s32 %s707, %s708
        %s710 = scalar_lea.vmem %s2, %s709
      $region40: #{_lambda_.3} parent=35 // pred_fallthru
        _
    $region36: #{_lambda_.3} parent=5 // pred_fallthru
      _
  $region6: #{_lambda_.3} parent=0 // loop_footer
    %s12 = sadd.s32 1, %s8
  $region7: #{_lambda_.3} parent=0 // loop_footer_branch
    %7 = sbr.rel target = $region3
  $region8: #{_lambda_.3} parent=0 // loop_exit
    _

// kernel: _lambda_.4
$region0: #{_lambda_.4}
  #allocation0 [shape = 'u32[]', space=smem, size = 0x4, offset = 0x4, fixed_abs, tag = 'smem constant byte address 0x4 - core index']
  #allocation1 [shape = 'u32[72,128]{1,0:T(1,128)}', space=vmem, size = 0x9000, scoped, tag = 'internal scratch']
  %s0 = inlined_call_operand.vmem [shape: f32[2,2,256], index: 0, kind: input, shape index: {}]
  %s1 = inlined_call_operand.vmem [shape: f32[1,256], index: 1, kind: input, shape index: {}]
  %s2 = inlined_call_operand.vmem [shape: f32[256,128], index: 2, kind: input, shape index: {}]
  %s3 = inlined_call_operand.vmem [shape: f32[128,256], index: 3, kind: input, shape index: {}]
  %s4 = inlined_call_operand.vmem [shape: f32[256,128], index: 4, kind: input, shape index: {}]
  %s5 = inlined_call_operand.vmem [shape: f32[128,256], index: 5, kind: input, shape index: {}]
  %s6 = inlined_call_operand.vmem [shape: f32[2,16,128], index: 6, kind: input, shape index: {}]
  %s7 = inlined_call_operand.vmem [shape: f32[16,128], index: 7, kind: input, shape index: {}]
  %s8 = inlined_call_operand.vmem [shape: f32[8,16], index: 8, kind: input, shape index: {}]
  %s9 = inlined_call_operand.vmem [shape: f32[8,256], index: 9, kind: input, shape index: {}]
  %s10 = inlined_call_operand.vmem [shape: f32[8,128], index: 10, kind: input, shape index: {}]
  %s11 = inlined_call_operand.vmem [shape: f32[8,128], index: 11, kind: input, shape index: {}]
  %s12 = inlined_call_operand.vmem [shape: f32[2,8,256], index: 12, kind: output, shape index: {}]
  %s13 = sld [smem:[#allocation0]]
  $region58: #{_lambda_.4} parent=0
    _
  %s15 = ssub.s32 1, %s13
  %s16 = scalar_select 0, %s15, %s13
  // Predicated region
  $region2: #{_lambda_.4} parent=0 // pred_check
    _
  $region3: #{_lambda_.4} parent=0 // pred_check_branch
    %18 = sbr.rel (0) target = $region5
  $region4: #{_lambda_.4} parent=0 // pred_region
    _
  $region5: #{_lambda_.4} parent=0 // pred_fallthru
    _
  // Predicated region
  $region6: #{_lambda_.4} parent=0 // pred_check
    _
  $region7: #{_lambda_.4} parent=0 // pred_check_branch
    %20 = sbr.rel (0) target = $region9
  $region8: #{_lambda_.4} parent=0 // pred_region
    _
  $region9: #{_lambda_.4} parent=0 // pred_fallthru
    _
  // Predicated region
  $region10: #{_lambda_.4} parent=0 // pred_check
    _
  $region11: #{_lambda_.4} parent=0 // pred_check_branch
    %22 = sbr.rel (0) target = $region13
  $region12: #{_lambda_.4} parent=0 // pred_region
    _
  $region13: #{_lambda_.4} parent=0 // pred_fallthru
    _
  // Predicated region
  $region14: #{_lambda_.4} parent=0 // pred_check
    _
  $region15: #{_lambda_.4} parent=0 // pred_check_branch
    %24 = sbr.rel (0) target = $region17
  $region16: #{_lambda_.4} parent=0 // pred_region
    _
  $region17: #{_lambda_.4} parent=0 // pred_fallthru
    _
  // Predicated region
  $region18: #{_lambda_.4} parent=0 // pred_check
    _
  $region19: #{_lambda_.4} parent=0 // pred_check_branch
    %26 = sbr.rel (0) target = $region21
  $region20: #{_lambda_.4} parent=0 // pred_region
    _
  $region21: #{_lambda_.4} parent=0 // pred_fallthru
    _
  // Predicated region
  $region22: #{_lambda_.4} parent=0 // pred_check
    _
  $region23: #{_lambda_.4} parent=0 // pred_check_branch
    %28 = sbr.rel (0) target = $region25
  $region24: #{_lambda_.4} parent=0 // pred_region
    _
  $region25: #{_lambda_.4} parent=0 // pred_fallthru
    _
  // Predicated region
  $region26: #{_lambda_.4} parent=0 // pred_check
    _
  $region27: #{_lambda_.4} parent=0 // pred_check_branch
    %30 = sbr.rel (0) target = $region29
  $region28: #{_lambda_.4} parent=0 // pred_region
    _
  $region29: #{_lambda_.4} parent=0 // pred_fallthru
    _
  // Predicated region
  $region30: #{_lambda_.4} parent=0 // pred_check
    _
  $region31: #{_lambda_.4} parent=0 // pred_check_branch
    %32 = sbr.rel (0) target = $region33
  $region32: #{_lambda_.4} parent=0 // pred_region
    _
  $region33: #{_lambda_.4} parent=0 // pred_fallthru
    _
  // Predicated region
  $region34: #{_lambda_.4} parent=0 // pred_check
    _
  $region35: #{_lambda_.4} parent=0 // pred_check_branch
    %34 = sbr.rel (0) target = $region37
  $region36: #{_lambda_.4} parent=0 // pred_region
    _
  $region37: #{_lambda_.4} parent=0 // pred_fallthru
    _
  // Predicated region
  $region38: #{_lambda_.4} parent=0 // pred_check
    _
  $region39: #{_lambda_.4} parent=0 // pred_check_branch
    %36 = sbr.rel (0) target = $region41
  $region40: #{_lambda_.4} parent=0 // pred_region
    _
  $region41: #{_lambda_.4} parent=0 // pred_fallthru
    _
  // Predicated region
  $region42: #{_lambda_.4} parent=0 // pred_check
    _
  $region43: #{_lambda_.4} parent=0 // pred_check_branch
    %38 = sbr.rel (0) target = $region45
  $region44: #{_lambda_.4} parent=0 // pred_region
    _
  $region45: #{_lambda_.4} parent=0 // pred_fallthru
    _
  // Predicated region
  $region46: #{_lambda_.4} parent=0 // pred_check
    _
  $region47: #{_lambda_.4} parent=0 // pred_check_branch
    %40 = sbr.rel (0) target = $region49
  $region48: #{_lambda_.4} parent=0 // pred_region
    _
  $region49: #{_lambda_.4} parent=0 // pred_fallthru
    _
  %v41 = vld [vmem:[%s1] sm:$0x3]
  %v42 = vld [vmem:[%s2] sm:$0xff]
  %v43 = vld [vmem:[%s2 + $0x8] sm:$0xff]
  %v44 = vld [vmem:[%s2 + $0x10] sm:$0xff]
  %v45 = vld [vmem:[%s2 + $0x18] sm:$0xff]
  %v46 = vld [vmem:[%s2 + $0x20] sm:$0xff]
  %v47 = vld [vmem:[%s2 + $0x28] sm:$0xff]
  %v48 = vld [vmem:[%s2 + $0x30] sm:$0xff]
  %v49 = vld [vmem:[%s2 + $0x38] sm:$0xff]
  %v50 = vld [vmem:[%s2 + $0x40] sm:$0xff]
  %v51 = vld [vmem:[%s2 + $0x48] sm:$0xff]
  %v52 = vld [vmem:[%s2 + $0x50] sm:$0xff]
  %v53 = vld [vmem:[%s2 + $0x58] sm:$0xff]
  %v54 = vld [vmem:[%s2 + $0x60] sm:$0xff]
  %v55 = vld [vmem:[%s2 + $0x68] sm:$0xff]
  %v56 = vld [vmem:[%s2 + $0x70] sm:$0xff]
  %v57 = vld [vmem:[%s2 + $0x78] sm:$0xff]
  %v58 = vld [vmem:[%s2 + $0x80] sm:$0xff]
  %v59 = vld [vmem:[%s2 + $0x88] sm:$0xff]
  %v60 = vld [vmem:[%s2 + $0x90] sm:$0xff]
  %v61 = vld [vmem:[%s2 + $0x98] sm:$0xff]
  %v62 = vld [vmem:[%s2 + $0xa0] sm:$0xff]
  %v63 = vld [vmem:[%s2 + $0xa8] sm:$0xff]
  %v64 = vld [vmem:[%s2 + $0xb0] sm:$0xff]
  %v65 = vld [vmem:[%s2 + $0xb8] sm:$0xff]
  %v66 = vld [vmem:[%s2 + $0xc0] sm:$0xff]
  %v67 = vld [vmem:[%s2 + $0xc8] sm:$0xff]
  %v68 = vld [vmem:[%s2 + $0xd0] sm:$0xff]
  %v69 = vld [vmem:[%s2 + $0xd8] sm:$0xff]
  %v70 = vld [vmem:[%s2 + $0xe0] sm:$0xff]
  %v71 = vld [vmem:[%s2 + $0xe8] sm:$0xff]
  %v72 = vld [vmem:[%s2 + $0xf0] sm:$0xff]
  %v73 = vld [vmem:[%s2 + $0xf8] sm:$0xff]
  %v74 = vld [vmem:[%s7] sm:$0xff]
  %v75 = vld [vmem:[%s7 + $0x8] sm:$0xff]
  %v76 = vld [vmem:[%s0] sm:$0xf]
  %v78 = vperm.slane %v41, 0
  %v79 = vperm.slane %v41, 1
  %v80 = vrot.slane %v79, 6
  %vm81 = vcmask 1041408
  %v82 = vsel %vm81, %v78, %v80
  %v84 = vmul.f32 %v76, %v82
  %86 = vst [vmem:[#allocation1] ss:$4 sm:$0xff] %v84
  %v87 = vld.sshfl [vmem:[#allocation1] sm:$0xff pattern:$0x73625140]
  %v88 = vld.sshfl [vmem:[#allocation1 + $0x8] sm:$0xff pattern:$0x73625140]
  %91 = vmatpush.msra.mxu0 %v57
  %92 = vmatpush.msra.mxu0 %v56
  %93 = vmatpush.msra.mxu0 %v55
  %94 = vmatpush.msra.mxu0 %v54
  %95 = vmatpush.msra.mxu0 %v53
  %96 = vmatpush.msra.mxu0 %v52
  %97 = vmatpush.msra.mxu0 %v51
  %98 = vmatpush.msra.mxu0 %v50
  %99 = vmatpush.msra.mxu0 %v49
  %100 = vmatpush.msra.mxu0 %v48
  %101 = vmatpush.msra.mxu0 %v47
  %102 = vmatpush.msra.mxu0 %v46
  %103 = vmatpush.msra.mxu0 %v45
  %104 = vmatpush.msra.mxu0 %v44
  %105 = vmatpush.msra.mxu0 %v43
  %106 = vmatpush.msra.mxu0 %v42
  %107 = vmatmul.f32.gmra.mxu0 %v87
  %v108 = vpop.f32.mrf.mxu0
  %v109 = vadd.f32 0.0, %v108
  %110 = vdwg.mxu0
  %111 = vmatpush.msra.mxu0 %v73
  %112 = vmatpush.msra.mxu0 %v72
  %113 = vmatpush.msra.mxu0 %v71
  %114 = vmatpush.msra.mxu0 %v70
  %115 = vmatpush.msra.mxu0 %v69
  %116 = vmatpush.msra.mxu0 %v68
  %117 = vmatpush.msra.mxu0 %v67
  %118 = vmatpush.msra.mxu0 %v66
  %119 = vmatpush.msra.mxu0 %v65
  %120 = vmatpush.msra.mxu0 %v64
  %121 = vmatpush.msra.mxu0 %v63
  %122 = vmatpush.msra.mxu0 %v62
  %123 = vmatpush.msra.mxu0 %v61
  %124 = vmatpush.msra.mxu0 %v60
  %125 = vmatpush.msra.mxu0 %v59
  %126 = vmatpush.msra.mxu0 %v58
  %127 = vmatmul.f32.gmra.mxu0 %v88
  %v128 = vpop.f32.mrf.mxu0
  %v129 = vadd.f32 %v109, %v128
  %130 = vdwg.mxu0
  %v131 = vld [vmem:[%s6] sm:$0xff]
  %v132 = vld [vmem:[%s6 + $0x8] sm:$0xff]
  %v133 = vperm.slane %v129, 0
  %v134 = vmul.f32 %v131, %v133
  %v135 = vmul.f32 %v132, %v133
  %v136 = vadd.f32 %v74, %v134
  %v137 = vadd.f32 %v75, %v135
  %s138 = scalar_lea.vmem %s6, 16
  %v139 = vld [vmem:[%s138] sm:$0xff]
  %v140 = vld [vmem:[%s138 + $0x8] sm:$0xff]
  %v141 = vperm.slane %v129, 1
  %v142 = vmul.f32 %v139, %v141
  %v143 = vmul.f32 %v140, %v141
  %v144 = vadd.f32 %v136, %v142
  %v145 = vadd.f32 %v137, %v143
  %s146 = scalar_lea.vmem %s0, 4
  %v147 = vld [vmem:[%s146] sm:$0xf]
  %v148 = vmul.f32 %v147, %v82
  %150 = vst [vmem:[#allocation1] ss:$4 sm:$0xff] %v148
  %v151 = vld.sshfl [vmem:[#allocation1] sm:$0xff pattern:$0x73625140]
  %v152 = vld.sshfl [vmem:[#allocation1 + $0x8] sm:$0xff pattern:$0x73625140]
  %155 = vmatpush.msra.mxu0 %v57
  %156 = vmatpush.msra.mxu0 %v56
  %157 = vmatpush.msra.mxu0 %v55
  %158 = vmatpush.msra.mxu0 %v54
  %159 = vmatpush.msra.mxu0 %v53
  %160 = vmatpush.msra.mxu0 %v52
  %161 = vmatpush.msra.mxu0 %v51
  %162 = vmatpush.msra.mxu0 %v50
  %163 = vmatpush.msra.mxu0 %v49
  %164 = vmatpush.msra.mxu0 %v48
  %165 = vmatpush.msra.mxu0 %v47
  %166 = vmatpush.msra.mxu0 %v46
  %167 = vmatpush.msra.mxu0 %v45
  %168 = vmatpush.msra.mxu0 %v44
  %169 = vmatpush.msra.mxu0 %v43
  %170 = vmatpush.msra.mxu0 %v42
  %171 = vmatmul.f32.gmra.mxu0 %v151
  %v172 = vpop.f32.mrf.mxu0
  %v173 = vadd.f32 0.0, %v172
  %174 = vdwg.mxu0
  %175 = vmatpush.msra.mxu0 %v73
  %176 = vmatpush.msra.mxu0 %v72
  %177 = vmatpush.msra.mxu0 %v71
  %178 = vmatpush.msra.mxu0 %v70
  %179 = vmatpush.msra.mxu0 %v69
  %180 = vmatpush.msra.mxu0 %v68
  %181 = vmatpush.msra.mxu0 %v67
  %182 = vmatpush.msra.mxu0 %v66
  %183 = vmatpush.msra.mxu0 %v65
  %184 = vmatpush.msra.mxu0 %v64
  %185 = vmatpush.msra.mxu0 %v63
  %186 = vmatpush.msra.mxu0 %v62
  %187 = vmatpush.msra.mxu0 %v61
  %188 = vmatpush.msra.mxu0 %v60
  %189 = vmatpush.msra.mxu0 %v59
  %190 = vmatpush.msra.mxu0 %v58
  %191 = vmatmul.f32.gmra.mxu0 %v152
  %v192 = vpop.f32.mrf.mxu0
  %v193 = vadd.f32 %v173, %v192
  %194 = vdwg.mxu0
  %v195 = vperm.slane %v193, 0
  %v196 = vmul.f32 %v131, %v195
  %v197 = vmul.f32 %v132, %v195
  %v198 = vadd.f32 %v74, %v196
  %v199 = vadd.f32 %v75, %v197
  %v200 = vperm.slane %v193, 1
  %v201 = vmul.f32 %v139, %v200
  %v202 = vmul.f32 %v140, %v200
  %v203 = vadd.f32 %v198, %v201
  %v204 = vadd.f32 %v199, %v202
  %v205 = vld [vmem:[%s3] sm:$0xff]
  %v206 = vld [vmem:[%s3 + $0x8] sm:$0xff]
  %v207 = vld [vmem:[%s3 + $0x10] sm:$0xff]
  %v208 = vld [vmem:[%s3 + $0x18] sm:$0xff]
  %v209 = vld [vmem:[%s3 + $0x20] sm:$0xff]
  %v210 = vld [vmem:[%s3 + $0x28] sm:$0xff]
  %v211 = vld [vmem:[%s3 + $0x30] sm:$0xff]
  %v212 = vld [vmem:[%s3 + $0x38] sm:$0xff]
  %v213 = vld [vmem:[%s3 + $0x40] sm:$0xff]
  %v214 = vld [vmem:[%s3 + $0x48] sm:$0xff]
  %v215 = vld [vmem:[%s3 + $0x50] sm:$0xff]
  %v216 = vld [vmem:[%s3 + $0x58] sm:$0xff]
  %v217 = vld [vmem:[%s3 + $0x60] sm:$0xff]
  %v218 = vld [vmem:[%s3 + $0x68] sm:$0xff]
  %v219 = vld [vmem:[%s3 + $0x70] sm:$0xff]
  %v220 = vld [vmem:[%s3 + $0x78] sm:$0xff]
  %v221 = vld [vmem:[%s3 + $0x80] sm:$0xff]
  %v222 = vld [vmem:[%s3 + $0x88] sm:$0xff]
  %v223 = vld [vmem:[%s3 + $0x90] sm:$0xff]
  %v224 = vld [vmem:[%s3 + $0x98] sm:$0xff]
  %v225 = vld [vmem:[%s3 + $0xa0] sm:$0xff]
  %v226 = vld [vmem:[%s3 + $0xa8] sm:$0xff]
  %v227 = vld [vmem:[%s3 + $0xb0] sm:$0xff]
  %v228 = vld [vmem:[%s3 + $0xb8] sm:$0xff]
  %v229 = vld [vmem:[%s3 + $0xc0] sm:$0xff]
  %v230 = vld [vmem:[%s3 + $0xc8] sm:$0xff]
  %v231 = vld [vmem:[%s3 + $0xd0] sm:$0xff]
  %v232 = vld [vmem:[%s3 + $0xd8] sm:$0xff]
  %v233 = vld [vmem:[%s3 + $0xe0] sm:$0xff]
  %v234 = vld [vmem:[%s3 + $0xe8] sm:$0xff]
  %v235 = vld [vmem:[%s3 + $0xf0] sm:$0xff]
  %v236 = vld [vmem:[%s3 + $0xf8] sm:$0xff]
  %237 = vmatpush.msra.mxu0 %v235
  %238 = vmatpush.msra.mxu0 %v233
  %239 = vmatpush.msra.mxu0 %v231
  %240 = vmatpush.msra.mxu0 %v229
  %241 = vmatpush.msra.mxu0 %v227
  %242 = vmatpush.msra.mxu0 %v225
  %243 = vmatpush.msra.mxu0 %v223
  %244 = vmatpush.msra.mxu0 %v221
  %245 = vmatpush.msra.mxu0 %v219
  %246 = vmatpush.msra.mxu0 %v217
  %247 = vmatpush.msra.mxu0 %v215
  %248 = vmatpush.msra.mxu0 %v213
  %249 = vmatpush.msra.mxu0 %v211
  %250 = vmatpush.msra.mxu0 %v209
  %251 = vmatpush.msra.mxu0 %v207
  %252 = vmatpush.msra.mxu0 %v205
  %253 = vmatmul.f32.gmra.mxu0 %v144
  %v254 = vpop.f32.mrf.mxu0
  %v255 = vadd.f32 0.0, %v254
  %256 = vmatmul.f32.gmra.mxu0 %v145
  %v257 = vpop.f32.mrf.mxu0
  %v258 = vadd.f32 0.0, %v257
  %259 = vmatmul.f32.gmra.mxu0 %v203
  %v260 = vpop.f32.mrf.mxu0
  %v261 = vadd.f32 0.0, %v260
  %262 = vmatmul.f32.gmra.mxu0 %v204
  %v263 = vpop.f32.mrf.mxu0
  %v264 = vadd.f32 0.0, %v263
  %265 = vdwg.mxu0
  %266 = vmatpush.msra.mxu0 %v236
  %267 = vmatpush.msra.mxu0 %v234
  %268 = vmatpush.msra.mxu0 %v232
  %269 = vmatpush.msra.mxu0 %v230
  %270 = vmatpush.msra.mxu0 %v228
  %271 = vmatpush.msra.mxu0 %v226
  %272 = vmatpush.msra.mxu0 %v224
  %273 = vmatpush.msra.mxu0 %v222
  %274 = vmatpush.msra.mxu0 %v220
  %275 = vmatpush.msra.mxu0 %v218
  %276 = vmatpush.msra.mxu0 %v216
  %277 = vmatpush.msra.mxu0 %v214
  %278 = vmatpush.msra.mxu0 %v212
  %279 = vmatpush.msra.mxu0 %v210
  %280 = vmatpush.msra.mxu0 %v208
  %281 = vmatpush.msra.mxu0 %v206
  %282 = vmatmul.f32.gmra.mxu0 %v144
  %v283 = vpop.f32.mrf.mxu0
  %v284 = vadd.f32 0.0, %v283
  %285 = vmatmul.f32.gmra.mxu0 %v145
  %v286 = vpop.f32.mrf.mxu0
  %v287 = vadd.f32 0.0, %v286
  %288 = vmatmul.f32.gmra.mxu0 %v203
  %v289 = vpop.f32.mrf.mxu0
  %v290 = vadd.f32 0.0, %v289
  %291 = vmatmul.f32.gmra.mxu0 %v204
  %v292 = vpop.f32.mrf.mxu0
  %v293 = vadd.f32 0.0, %v292
  %294 = vdwg.mxu0
  %v295 = vmax.f32 %v255, 0.0
  %v296 = vmax.f32 %v284, 0.0
  %v297 = vmax.f32 %v258, 0.0
  %v298 = vmax.f32 %v287, 0.0
  %v299 = vmax.f32 %v261, 0.0
  %v300 = vmax.f32 %v290, 0.0
  %v301 = vmax.f32 %v264, 0.0
  %v302 = vmax.f32 %v293, 0.0
  %v303 = vld [vmem:[%s8] sm:$0xff]
  %v304 = vld [vmem:[%s9] sm:$0xff]
  %v305 = vld [vmem:[%s9 + $0x8] sm:$0xff]
  %vm306 = vcmask 130048
  %v308 = vsel %vm306, %v303, 0
  %310 = vmatpush.msra.mxu0 0.0
  %311 = vmatpush.msra.mxu0 0.0
  %312 = vmatpush.msra.mxu0 0.0
  %313 = vmatpush.msra.mxu0 0.0
  %314 = vmatpush.msra.mxu0 0.0
  %315 = vmatpush.msra.mxu0 0.0
  %316 = vmatpush.msra.mxu0 0.0
  %317 = vmatpush.msra.mxu0 0.0
  %318 = vmatpush.msra.mxu0 0.0
  %319 = vmatpush.msra.mxu0 0.0
  %320 = vmatpush.msra.mxu0 0.0
  %321 = vmatpush.msra.mxu0 0.0
  %322 = vmatpush.msra.mxu0 0.0
  %323 = vmatpush.msra.mxu0 0.0
  %324 = vmatpush.msra.mxu0 %v297
  %325 = vmatpush.msra.mxu0 %v295
  %326 = vmatmul.f32.gmra.mxu0 %v308
  %v327 = vpop.f32.mrf.mxu0
  %v328 = vadd.f32 %v304, %v327
  %329 = vdwg.mxu0
  %330 = vmatpush.msra.mxu0 0.0
  %331 = vmatpush.msra.mxu0 0.0
  %332 = vmatpush.msra.mxu0 0.0
  %333 = vmatpush.msra.mxu0 0.0
  %334 = vmatpush.msra.mxu0 0.0
  %335 = vmatpush.msra.mxu0 0.0
  %336 = vmatpush.msra.mxu0 0.0
  %337 = vmatpush.msra.mxu0 0.0
  %338 = vmatpush.msra.mxu0 0.0
  %339 = vmatpush.msra.mxu0 0.0
  %340 = vmatpush.msra.mxu0 0.0
  %341 = vmatpush.msra.mxu0 0.0
  %342 = vmatpush.msra.mxu0 0.0
  %343 = vmatpush.msra.mxu0 0.0
  %344 = vmatpush.msra.mxu0 %v298
  %345 = vmatpush.msra.mxu0 %v296
  %346 = vmatmul.f32.gmra.mxu0 %v308
  %v347 = vpop.f32.mrf.mxu0
  %v348 = vadd.f32 %v305, %v347
  %349 = vdwg.mxu0
  %350 = vmatpush.msra.mxu0 0.0
  %351 = vmatpush.msra.mxu0 0.0
  %352 = vmatpush.msra.mxu0 0.0
  %353 = vmatpush.msra.mxu0 0.0
  %354 = vmatpush.msra.mxu0 0.0
  %355 = vmatpush.msra.mxu0 0.0
  %356 = vmatpush.msra.mxu0 0.0
  %357 = vmatpush.msra.mxu0 0.0
  %358 = vmatpush.msra.mxu0 0.0
  %359 = vmatpush.msra.mxu0 0.0
  %360 = vmatpush.msra.mxu0 0.0
  %361 = vmatpush.msra.mxu0 0.0
  %362 = vmatpush.msra.mxu0 0.0
  %363 = vmatpush.msra.mxu0 0.0
  %364 = vmatpush.msra.mxu0 %v301
  %365 = vmatpush.msra.mxu0 %v299
  %366 = vmatmul.f32.gmra.mxu0 %v308
  %v367 = vpop.f32.mrf.mxu0
  %v368 = vadd.f32 %v304, %v367
  %369 = vdwg.mxu0
  %370 = vmatpush.msra.mxu0 0.0
  %371 = vmatpush.msra.mxu0 0.0
  %372 = vmatpush.msra.mxu0 0.0
  %373 = vmatpush.msra.mxu0 0.0
  %374 = vmatpush.msra.mxu0 0.0
  %375 = vmatpush.msra.mxu0 0.0
  %376 = vmatpush.msra.mxu0 0.0
  %377 = vmatpush.msra.mxu0 0.0
  %378 = vmatpush.msra.mxu0 0.0
  %379 = vmatpush.msra.mxu0 0.0
  %380 = vmatpush.msra.mxu0 0.0
  %381 = vmatpush.msra.mxu0 0.0
  %382 = vmatpush.msra.mxu0 0.0
  %383 = vmatpush.msra.mxu0 0.0
  %384 = vmatpush.msra.mxu0 %v302
  %385 = vmatpush.msra.mxu0 %v300
  %386 = vmatmul.f32.gmra.mxu0 %v308
  %v387 = vpop.f32.mrf.mxu0
  %v388 = vadd.f32 %v305, %v387
  %389 = vdwg.mxu0
  %v392 = vmul.f32 %v328, %v78
  %v393 = vmul.f32 %v348, %v79
  %v394 = vmul.f32 %v368, %v78
  %v395 = vmul.f32 %v388, %v79
  %v396 = vld [vmem:[%s4] sm:$0xff]
  %v397 = vld [vmem:[%s4 + $0x8] sm:$0xff]
  %v398 = vld [vmem:[%s4 + $0x10] sm:$0xff]
  %v399 = vld [vmem:[%s4 + $0x18] sm:$0xff]
  %v400 = vld [vmem:[%s4 + $0x20] sm:$0xff]
  %v401 = vld [vmem:[%s4 + $0x28] sm:$0xff]
  %v402 = vld [vmem:[%s4 + $0x30] sm:$0xff]
  %v403 = vld [vmem:[%s4 + $0x38] sm:$0xff]
  %v404 = vld [vmem:[%s4 + $0x40] sm:$0xff]
  %v405 = vld [vmem:[%s4 + $0x48] sm:$0xff]
  %v406 = vld [vmem:[%s4 + $0x50] sm:$0xff]
  %v407 = vld [vmem:[%s4 + $0x58] sm:$0xff]
  %v408 = vld [vmem:[%s4 + $0x60] sm:$0xff]
  %v409 = vld [vmem:[%s4 + $0x68] sm:$0xff]
  %v410 = vld [vmem:[%s4 + $0x70] sm:$0xff]
  %v411 = vld [vmem:[%s4 + $0x78] sm:$0xff]
  %v412 = vld [vmem:[%s4 + $0x80] sm:$0xff]
  %v413 = vld [vmem:[%s4 + $0x88] sm:$0xff]
  %v414 = vld [vmem:[%s4 + $0x90] sm:$0xff]
  %v415 = vld [vmem:[%s4 + $0x98] sm:$0xff]
  %v416 = vld [vmem:[%s4 + $0xa0] sm:$0xff]
  %v417 = vld [vmem:[%s4 + $0xa8] sm:$0xff]
  %v418 = vld [vmem:[%s4 + $0xb0] sm:$0xff]
  %v419 = vld [vmem:[%s4 + $0xb8] sm:$0xff]
  %v420 = vld [vmem:[%s4 + $0xc0] sm:$0xff]
  %v421 = vld [vmem:[%s4 + $0xc8] sm:$0xff]
  %v422 = vld [vmem:[%s4 + $0xd0] sm:$0xff]
  %v423 = vld [vmem:[%s4 + $0xd8] sm:$0xff]
  %v424 = vld [vmem:[%s4 + $0xe0] sm:$0xff]
  %v425 = vld [vmem:[%s4 + $0xe8] sm:$0xff]
  %v426 = vld [vmem:[%s4 + $0xf0] sm:$0xff]
  %v427 = vld [vmem:[%s4 + $0xf8] sm:$0xff]
  %428 = vmatpush.msra.mxu0 %v411
  %429 = vmatpush.msra.mxu0 %v410
  %430 = vmatpush.msra.mxu0 %v409
  %431 = vmatpush.msra.mxu0 %v408
  %432 = vmatpush.msra.mxu0 %v407
  %433 = vmatpush.msra.mxu0 %v406
  %434 = vmatpush.msra.mxu0 %v405
  %435 = vmatpush.msra.mxu0 %v404
  %436 = vmatpush.msra.mxu0 %v403
  %437 = vmatpush.msra.mxu0 %v402
  %438 = vmatpush.msra.mxu0 %v401
  %439 = vmatpush.msra.mxu0 %v400
  %440 = vmatpush.msra.mxu0 %v399
  %441 = vmatpush.msra.mxu0 %v398
  %442 = vmatpush.msra.mxu0 %v397
  %443 = vmatpush.msra.mxu0 %v396
  %444 = vmatmul.f32.gmra.mxu0 %v392
  %v445 = vpop.f32.mrf.mxu0
  %v446 = vadd.f32 0.0, %v445
  %447 = vmatmul.f32.gmra.mxu0 %v394
  %v448 = vpop.f32.mrf.mxu0
  %v449 = vadd.f32 0.0, %v448
  %450 = vdwg.mxu0
  %451 = vmatpush.msra.mxu0 %v427
  %452 = vmatpush.msra.mxu0 %v426
  %453 = vmatpush.msra.mxu0 %v425
  %454 = vmatpush.msra.mxu0 %v424
  %455 = vmatpush.msra.mxu0 %v423
  %456 = vmatpush.msra.mxu0 %v422
  %457 = vmatpush.msra.mxu0 %v421
  %458 = vmatpush.msra.mxu0 %v420
  %459 = vmatpush.msra.mxu0 %v419
  %460 = vmatpush.msra.mxu0 %v418
  %461 = vmatpush.msra.mxu0 %v417
  %462 = vmatpush.msra.mxu0 %v416
  %463 = vmatpush.msra.mxu0 %v415
  %464 = vmatpush.msra.mxu0 %v414
  %465 = vmatpush.msra.mxu0 %v413
  %466 = vmatpush.msra.mxu0 %v412
  %467 = vmatmul.f32.gmra.mxu0 %v393
  %v468 = vpop.f32.mrf.mxu0
  %v469 = vadd.f32 %v446, %v468
  %470 = vmatmul.f32.gmra.mxu0 %v395
  %v471 = vpop.f32.mrf.mxu0
  %v472 = vadd.f32 %v449, %v471
  %473 = vdwg.mxu0
  %v474 = vld [vmem:[%s10] sm:$0xff]
  %v475 = vld [vmem:[%s11] sm:$0xff]
  %v476 = vmul.f32 %v469, %v474
  %v477 = vadd.f32 %v476, %v475
  %v478 = vmul.f32 %v472, %v474
  %v479 = vadd.f32 %v478, %v475
  %v480 = vld [vmem:[%s5] sm:$0xff]
  %v481 = vld [vmem:[%s5 + $0x8] sm:$0xff]
  %v482 = vld [vmem:[%s5 + $0x10] sm:$0xff]
  %v483 = vld [vmem:[%s5 + $0x18] sm:$0xff]
  %v484 = vld [vmem:[%s5 + $0x20] sm:$0xff]
  %v485 = vld [vmem:[%s5 + $0x28] sm:$0xff]
  %v486 = vld [vmem:[%s5 + $0x30] sm:$0xff]
  %v487 = vld [vmem:[%s5 + $0x38] sm:$0xff]
  %v488 = vld [vmem:[%s5 + $0x40] sm:$0xff]
  %v489 = vld [vmem:[%s5 + $0x48] sm:$0xff]
  %v490 = vld [vmem:[%s5 + $0x50] sm:$0xff]
  %v491 = vld [vmem:[%s5 + $0x58] sm:$0xff]
  %v492 = vld [vmem:[%s5 + $0x60] sm:$0xff]
  %v493 = vld [vmem:[%s5 + $0x68] sm:$0xff]
  %v494 = vld [vmem:[%s5 + $0x70] sm:$0xff]
  %v495 = vld [vmem:[%s5 + $0x78] sm:$0xff]
  %v496 = vld [vmem:[%s5 + $0x80] sm:$0xff]
  %v497 = vld [vmem:[%s5 + $0x88] sm:$0xff]
  %v498 = vld [vmem:[%s5 + $0x90] sm:$0xff]
  %v499 = vld [vmem:[%s5 + $0x98] sm:$0xff]
  %v500 = vld [vmem:[%s5 + $0xa0] sm:$0xff]
  %v501 = vld [vmem:[%s5 + $0xa8] sm:$0xff]
  %v502 = vld [vmem:[%s5 + $0xb0] sm:$0xff]
  %v503 = vld [vmem:[%s5 + $0xb8] sm:$0xff]
  %v504 = vld [vmem:[%s5 + $0xc0] sm:$0xff]
  %v505 = vld [vmem:[%s5 + $0xc8] sm:$0xff]
  %v506 = vld [vmem:[%s5 + $0xd0] sm:$0xff]
  %v507 = vld [vmem:[%s5 + $0xd8] sm:$0xff]
  %v508 = vld [vmem:[%s5 + $0xe0] sm:$0xff]
  %v509 = vld [vmem:[%s5 + $0xe8] sm:$0xff]
  %v510 = vld [vmem:[%s5 + $0xf0] sm:$0xff]
  %v511 = vld [vmem:[%s5 + $0xf8] sm:$0xff]
  %512 = vmatpush.msra.mxu0 %v510
  %513 = vmatpush.msra.mxu0 %v508
  %514 = vmatpush.msra.mxu0 %v506
  %515 = vmatpush.msra.mxu0 %v504
  %516 = vmatpush.msra.mxu0 %v502
  %517 = vmatpush.msra.mxu0 %v500
  %518 = vmatpush.msra.mxu0 %v498
  %519 = vmatpush.msra.mxu0 %v496
  %520 = vmatpush.msra.mxu0 %v494
  %521 = vmatpush.msra.mxu0 %v492
  %522 = vmatpush.msra.mxu0 %v490
  %523 = vmatpush.msra.mxu0 %v488
  %524 = vmatpush.msra.mxu0 %v486
  %525 = vmatpush.msra.mxu0 %v484
  %526 = vmatpush.msra.mxu0 %v482
  %527 = vmatpush.msra.mxu0 %v480
  %528 = vmatmul.f32.gmra.mxu0 %v477
  %v529 = vpop.f32.mrf.mxu0
  %v530 = vadd.f32 0.0, %v529
  %531 = vmatmul.f32.gmra.mxu0 %v479
  %v532 = vpop.f32.mrf.mxu0
  %v533 = vadd.f32 0.0, %v532
  %534 = vdwg.mxu0
  %535 = vmatpush.msra.mxu0 %v511
  %536 = vmatpush.msra.mxu0 %v509
  %537 = vmatpush.msra.mxu0 %v507
  %538 = vmatpush.msra.mxu0 %v505
  %539 = vmatpush.msra.mxu0 %v503
  %540 = vmatpush.msra.mxu0 %v501
  %541 = vmatpush.msra.mxu0 %v499
  %542 = vmatpush.msra.mxu0 %v497
  %543 = vmatpush.msra.mxu0 %v495
  %544 = vmatpush.msra.mxu0 %v493
  %545 = vmatpush.msra.mxu0 %v491
  %546 = vmatpush.msra.mxu0 %v489
  %547 = vmatpush.msra.mxu0 %v487
  %548 = vmatpush.msra.mxu0 %v485
  %549 = vmatpush.msra.mxu0 %v483
  %550 = vmatpush.msra.mxu0 %v481
  %551 = vmatmul.f32.gmra.mxu0 %v477
  %v552 = vpop.f32.mrf.mxu0
  %v553 = vadd.f32 0.0, %v552
  %554 = vmatmul.f32.gmra.mxu0 %v479
  %v555 = vpop.f32.mrf.mxu0
  %v556 = vadd.f32 0.0, %v555
  %557 = vdwg.mxu0
  %558 = vst [vmem:[%s12] sm:$0xff] %v530
  %559 = vst [vmem:[%s12 + $0x8] sm:$0xff] %v553
  %s560 = scalar_lea.vmem %s12, 16
  %561 = vst [vmem:[%s560] sm:$0xff] %v533
  %562 = vst [vmem:[%s560 + $0x8] sm:$0xff] %v556
  // Predicated region
  $region50: #{_lambda_.4} parent=0 // pred_check
    _
  $region51: #{_lambda_.4} parent=0 // pred_check_branch
    %564 = sbr.rel (0) target = $region53
  $region52: #{_lambda_.4} parent=0 // pred_region
    _
  $region53: #{_lambda_.4} parent=0 // pred_fallthru
    _
  // Predicated region
  $region54: #{_lambda_.4} parent=0 // pred_check
    _
  $region55: #{_lambda_.4} parent=0 // pred_check_branch
    %566 = sbr.rel (0) target = $region57
  $region56: #{_lambda_.4} parent=0 // pred_region
    _
  $region57: #{_lambda_.4} parent=0 // pred_fallthru
    _

// kernel: _lambda_.5
$region0: #{_lambda_.5}
  #allocation0 [shape = 'u32[]', space=smem, size = 0x4, offset = 0x4, fixed_abs, tag = 'smem constant byte address 0x4 - core index']
  #allocation1 [shape = 'u32[72,128]{1,0:T(1,128)}', space=vmem, size = 0x9000, scoped, tag = 'internal scratch']
  %s0 = inlined_call_operand.vmem [shape: f32[1,8,256], index: 0, kind: input, shape index: {}]
  %s1 = inlined_call_operand.vmem [shape: f32[256,8], index: 1, kind: input, shape index: {}]
  %s2 = inlined_call_operand.vmem [shape: s32[1,1,256], index: 2, kind: output, shape index: {}]
  %s3 = sld [smem:[#allocation0]]
  $region41: #{_lambda_.5} parent=0
    _
  %s5 = ssub.s32 1, %s3
  %s6 = scalar_select 0, %s5, %s3
  loop: start=0, step=1, limit=4
  $region2: #{_lambda_.5} parent=0 // loop_pre_header
    _
  $region3: #{_lambda_.5} parent=0 // loop_header
    %s8 = sphi 0, %s12
    %p9 = scmp.ge.s32.totalorder %s8, 4
    %s15 = sphi 0, %s27
    %s16 = sphi 0, %s23
    %s17 = sphi 0, %s15
    %s18 = sphi 0, %s16
    %s19 = sphi 0, %s17
    %s20 = sphi 0, %s18
    %s32 = sphi 0, %s34
    %s35 = sphi 0, %s32
    %s36 = sphi 0, %s35
    %s52 = sphi 0, %s36
    %s56 = sphi 0, %s56
    %s58 = sphi 0, %s56
    %s59 = sphi 0, %s58
    %s73 = sphi 0, %s59
    %s81 = sphi 0, %s83
    %s84 = sphi 0, %s81
    %s85 = sphi 0, %s84
    %s101 = sphi 0, %s85
  $region4: #{_lambda_.5} parent=0 // loop_header_branch
    %11 = sbr.rel (%p9) target = $region8
  $region5: #{_lambda_.5} parent=0 // loop_body
    %s13 = ssub.s32 %s8, 1
    %s14 = ssub.s32 %s8, 2
    %s21 = sadd.s32 1, %s16
    %p22 = scmp.ge.s32.totalorder %s21, 2
    %s23 = scalar_select %p22, 0, %s21
    %s24 = sadd.s32 1, %s15
    %s25 = scalar_select %p22, %s24, %s15
    %p26 = scmp.ge.s32.totalorder %s25, 1
    %s27 = scalar_select %p26, 0, %s25
    %s28 = ssub.s32 %s15, %s27
    %s29 = ssub.s32 %s16, %s23
    %s30 = sor.u32 %s28, %s29
    %p31 = scmp.eq.s32.totalorder %s30, 0
    %s33 = sadd.s32 %s32, 1
    %s34 = scalar_select %p31, %s32, %s33
    %p37 = pneg %p31
    %p38 = scmp.eq.s32.totalorder %s8, 1
    %p39 = por %p37, %p38
    %p40 = scmp.ne.s32.totalorder %s32, %s35
    %p41 = scmp.eq.s32.totalorder %s8, 0
    %p42 = por %p40, %p41
    %p43 = scmp.ne.s32.totalorder %s32, %s35
    %p44 = scmp.eq.s32.totalorder %s13, 1
    %p45 = por %p43, %p44
    %p46 = scmp.ne.s32.totalorder %s35, %s36
    %p47 = scmp.eq.s32.totalorder %s13, 0
    %p48 = por %p46, %p47
    %p49 = scmp.ne.s32.totalorder %s35, %s36
    %p50 = scmp.eq.s32.totalorder %s14, 1
    %p51 = por %p49, %p50
    %p53 = scmp.ne.s32.totalorder %s36, %s52
    %p54 = scmp.eq.s32.totalorder %s14, 0
    %p55 = por %p53, %p54
    %s57 = sadd.s32 %s56, 1
    %p60 = scmp.eq.s32.totalorder %s8, 1
    %p61 = scmp.ne.s32.totalorder %s56, %s58
    %p62 = scmp.eq.s32.totalorder %s8, 0
    %p63 = por %p61, %p62
    %p64 = scmp.ne.s32.totalorder %s56, %s58
    %p65 = scmp.eq.s32.totalorder %s13, 1
    %p66 = por %p64, %p65
    %p67 = scmp.ne.s32.totalorder %s58, %s59
    %p68 = scmp.eq.s32.totalorder %s13, 0
    %p69 = por %p67, %p68
    %p70 = scmp.ne.s32.totalorder %s58, %s59
    %p71 = scmp.eq.s32.totalorder %s14, 1
    %p72 = por %p70, %p71
    %p74 = scmp.ne.s32.totalorder %s59, %s73
    %p75 = scmp.eq.s32.totalorder %s14, 0
    %p76 = por %p74, %p75
    %s77 = ssub.s32 %s15, %s27
    %s78 = ssub.s32 %s16, %s23
    %s79 = sor.u32 %s77, %s78
    %p80 = scmp.eq.s32.totalorder %s79, 0
    %s82 = sadd.s32 %s81, 1
    %s83 = scalar_select %p80, %s81, %s82
    %p86 = pneg %p80
    %p87 = scmp.eq.s32.totalorder %s8, 1
    %p88 = por %p86, %p87
    %p89 = scmp.ne.s32.totalorder %s81, %s84
    %p90 = scmp.eq.s32.totalorder %s8, 0
    %p91 = por %p89, %p90
    %p92 = scmp.ne.s32.totalorder %s81, %s84
    %p93 = scmp.eq.s32.totalorder %s13, 1
    %p94 = por %p92, %p93
    %p95 = scmp.ne.s32.totalorder %s84, %s85
    %p96 = scmp.eq.s32.totalorder %s13, 0
    %p97 = por %p95, %p96
    %p98 = scmp.ne.s32.totalorder %s84, %s85
    %p99 = scmp.eq.s32.totalorder %s14, 1
    %p100 = por %p98, %p99
    %p102 = scmp.ne.s32.totalorder %s85, %s101
    %p103 = scmp.eq.s32.totalorder %s14, 0
    %p104 = por %p102, %p103
    %p105 = scmp.le.s32.totalorder 1, %s8
    %p106 = scmp.lt.s32.totalorder %s8, 3
    %p107 = pnand %p105, %p106
    %p108 = pneg %p107
    // Predicated region
    $region9: #{_lambda_.5} parent=5 // pred_check
      _
    $region10: #{_lambda_.5} parent=5 // pred_check_branch
      %110 = sbr.rel (%p107) target = $region12
    $region11: #{_lambda_.5} parent=5 // pred_region
      %s111 = ssub.s32 %s8, 1
      // Predicated region
      $region13: #{_lambda_.5} parent=11 // pred_check
        %p112 = pneg %p69
      $region14: #{_lambda_.5} parent=11 // pred_check_branch
        %114 = sbr.rel (%p112) target = $region16
      $region15: #{_lambda_.5} parent=11 // pred_region
        _
      $region16: #{_lambda_.5} parent=11 // pred_fallthru
        _
    $region12: #{_lambda_.5} parent=5 // pred_fallthru
      _
    %p115 = scmp.lt.s32.totalorder %s8, 2
    // Predicated region
    $region17: #{_lambda_.5} parent=5 // pred_check
      %p116 = pneg %p115
    $region18: #{_lambda_.5} parent=5 // pred_check_branch
      %118 = sbr.rel (%p116) target = $region20
    $region19: #{_lambda_.5} parent=5 // pred_region
      // Predicated region
      $region21: #{_lambda_.5} parent=19 // pred_check
        %p119 = pneg %p42
      $region22: #{_lambda_.5} parent=19 // pred_check_branch
        %121 = sbr.rel (%p119) target = $region24
      $region23: #{_lambda_.5} parent=19 // pred_region
        %p122 = scmp.lt.s32.totalorder %s15, 0
        %s123 = scalar_select %p122, %s15, 0
        %p124 = scmp.lt.s32.totalorder %s16, 1
        %s125 = scalar_select %p124, %s16, 1
        %s126 = smul.addr %s123, 2
        %s127 = sadd.s32 %s125, %s126
        %s128 = smul.addr %s127, 8
        %s129 = scalar_lea.vmem %s0, %s128
      $region24: #{_lambda_.5} parent=19 // pred_fallthru
        _
    $region20: #{_lambda_.5} parent=5 // pred_fallthru
      _
    %p130 = scmp.le.s32.totalorder 1, %s8
    %p131 = scmp.lt.s32.totalorder %s8, 3
    %p132 = pnand %p130, %p131
    %p133 = pneg %p132
    // Predicated region
    $region25: #{_lambda_.5} parent=5 // pred_check
      _
    $region26: #{_lambda_.5} parent=5 // pred_check_branch
      %135 = sbr.rel (%p132) target = $region28
    $region27: #{_lambda_.5} parent=5 // pred_region
      %s136 = ssub.s32 %s8, 1
      %p137 = scmp.lt.s32.totalorder %s17, 0
      %s138 = scalar_select %p137, %s17, 0
      %p139 = scmp.lt.s32.totalorder %s18, 1
      %s140 = scalar_select %p139, %s18, 1
      %s141 = smul.addr %s138, 2
      %s142 = sadd.s32 %s140, %s141
      %s143 = smul.addr %s142, 8
      %s144 = scalar_lea.vmem %s0, %s143
      %p145 = pneg %p48
      %p146 = pneg %p45
      %p147 = pneg %p69
      %p148 = pneg %p66
      %p149 = pneg %p97
      %p150 = pneg %p94
      %p151 = scmp.lt.s32.totalorder %s17, 0
      %s152 = scalar_select %p151, %s17, 0
      %p153 = scmp.lt.s32.totalorder %s18, 1
      %s154 = scalar_select %p153, %s18, 1
      %s155 = smul.addr %s152, 2
      %s156 = sadd.s32 %s154, %s155
      %s157 = scalar_lea.vmem %s2, %s156
      %p158 = scmp.lt.s32.totalorder %s17, 0
      %s159 = scalar_select %p158, %s17, 0
      %p160 = scmp.lt.s32.totalorder %s18, 1
      %s161 = scalar_select %p160, %s18, 1
      %s162 = smul.addr %s159, 2
      %s163 = sadd.s32 %s161, %s162
      %s164 = smul.addr %s163, 8
      %s165 = scalar_lea.vmem %s0, %s164
      %p166 = scmp.lt.s32.totalorder %s17, 0
      %s167 = scalar_select %p166, %s17, 0
      %p168 = scmp.lt.s32.totalorder %s18, 1
      %s169 = scalar_select %p168, %s18, 1
      %s170 = smul.addr %s167, 2
      %s171 = sadd.s32 %s169, %s170
      %s172 = scalar_lea.vmem %s2, %s171
      %v173 = vld [vmem:[%s165] sm:$0xff]
      %v174 = vld [vmem:[%s1] sm:$0xff]
      %v175 = vld [vmem:[%s1 + $0x8] sm:$0xff]
      %v176 = vld [vmem:[%s1 + $0x10] sm:$0xff]
      %v177 = vld [vmem:[%s1 + $0x18] sm:$0xff]
      %v178 = vld [vmem:[%s1 + $0x20] sm:$0xff]
      %v179 = vld [vmem:[%s1 + $0x28] sm:$0xff]
      %v180 = vld [vmem:[%s1 + $0x30] sm:$0xff]
      %v181 = vld [vmem:[%s1 + $0x38] sm:$0xff]
      %v182 = vld [vmem:[%s1 + $0x40] sm:$0xff]
      %v183 = vld [vmem:[%s1 + $0x48] sm:$0xff]
      %v184 = vld [vmem:[%s1 + $0x50] sm:$0xff]
      %v185 = vld [vmem:[%s1 + $0x58] sm:$0xff]
      %v186 = vld [vmem:[%s1 + $0x60] sm:$0xff]
      %v187 = vld [vmem:[%s1 + $0x68] sm:$0xff]
      %v188 = vld [vmem:[%s1 + $0x70] sm:$0xff]
      %v189 = vld [vmem:[%s1 + $0x78] sm:$0xff]
      %v190 = vld [vmem:[%s1 + $0x80] sm:$0xff]
      %v191 = vld [vmem:[%s1 + $0x88] sm:$0xff]
      %v192 = vld [vmem:[%s1 + $0x90] sm:$0xff]
      %v193 = vld [vmem:[%s1 + $0x98] sm:$0xff]
      %v194 = vld [vmem:[%s1 + $0xa0] sm:$0xff]
      %v195 = vld [vmem:[%s1 + $0xa8] sm:$0xff]
      %v196 = vld [vmem:[%s1 + $0xb0] sm:$0xff]
      %v197 = vld [vmem:[%s1 + $0xb8] sm:$0xff]
      %v198 = vld [vmem:[%s1 + $0xc0] sm:$0xff]
      %v199 = vld [vmem:[%s1 + $0xc8] sm:$0xff]
      %v200 = vld [vmem:[%s1 + $0xd0] sm:$0xff]
      %v201 = vld [vmem:[%s1 + $0xd8] sm:$0xff]
      %v202 = vld [vmem:[%s1 + $0xe0] sm:$0xff]
      %v203 = vld [vmem:[%s1 + $0xe8] sm:$0xff]
      %v204 = vld [vmem:[%s1 + $0xf0] sm:$0xff]
      %v205 = vld [vmem:[%s1 + $0xf8] sm:$0xff]
      %vm206 = vcmask 64512
      %v208 = vsel %vm206, %v174, 0
      %v211 = vsel %vm206, %v175, 0
      %v214 = vsel %vm206, %v176, 0
      %v217 = vsel %vm206, %v177, 0
      %v220 = vsel %vm206, %v178, 0
      %v223 = vsel %vm206, %v179, 0
      %v226 = vsel %vm206, %v180, 0
      %v229 = vsel %vm206, %v181, 0
      %v232 = vsel %vm206, %v182, 0
      %v235 = vsel %vm206, %v183, 0
      %v238 = vsel %vm206, %v184, 0
      %v241 = vsel %vm206, %v185, 0
      %v244 = vsel %vm206, %v186, 0
      %v247 = vsel %vm206, %v187, 0
      %v250 = vsel %vm206, %v188, 0
      %v253 = vsel %vm206, %v189, 0
      %v256 = vsel %vm206, %v190, 0
      %v259 = vsel %vm206, %v191, 0
      %v262 = vsel %vm206, %v192, 0
      %v265 = vsel %vm206, %v193, 0
      %v268 = vsel %vm206, %v194, 0
      %v271 = vsel %vm206, %v195, 0
      %v274 = vsel %vm206, %v196, 0
      %v277 = vsel %vm206, %v197, 0
      %v280 = vsel %vm206, %v198, 0
      %v283 = vsel %vm206, %v199, 0
      %v286 = vsel %vm206, %v200, 0
      %v289 = vsel %vm206, %v201, 0
      %v292 = vsel %vm206, %v202, 0
      %v295 = vsel %vm206, %v203, 0
      %v298 = vsel %vm206, %v204, 0
      %v301 = vsel %vm206, %v205, 0
      %303 = vmatpush.msra.mxu0 0.0
      %304 = vmatpush.msra.mxu0 0.0
      %305 = vmatpush.msra.mxu0 0.0
      %306 = vmatpush.msra.mxu0 0.0
      %307 = vmatpush.msra.mxu0 0.0
      %308 = vmatpush.msra.mxu0 0.0
      %309 = vmatpush.msra.mxu0 0.0
      %310 = vmatpush.msra.mxu0 0.0
      %311 = vmatpush.msra.mxu0 0.0
      %312 = vmatpush.msra.mxu0 0.0
      %313 = vmatpush.msra.mxu0 0.0
      %314 = vmatpush.msra.mxu0 0.0
      %315 = vmatpush.msra.mxu0 0.0
      %316 = vmatpush.msra.mxu0 0.0
      %317 = vmatpush.msra.mxu0 0.0
      %318 = vmatpush.msra.mxu0 %v173
      %319 = vmatmul.f32.gmra.mxu0 %v208
      %v320 = vpop.f32.mrf.mxu0
      %v321 = vadd.f32 0.0, %v320
      %322 = vmatmul.f32.gmra.mxu0 %v211
      %v323 = vpop.f32.mrf.mxu0
      %v324 = vadd.f32 0.0, %v323
      %325 = vmatmul.f32.gmra.mxu0 %v214
      %v326 = vpop.f32.mrf.mxu0
      %v327 = vadd.f32 0.0, %v326
      %328 = vmatmul.f32.gmra.mxu0 %v217
      %v329 = vpop.f32.mrf.mxu0
      %v330 = vadd.f32 0.0, %v329
      %331 = vmatmul.f32.gmra.mxu0 %v220
      %v332 = vpop.f32.mrf.mxu0
      %v333 = vadd.f32 0.0, %v332
      %334 = vmatmul.f32.gmra.mxu0 %v223
      %v335 = vpop.f32.mrf.mxu0
      %v336 = vadd.f32 0.0, %v335
      %337 = vmatmul.f32.gmra.mxu0 %v226
      %v338 = vpop.f32.mrf.mxu0
      %v339 = vadd.f32 0.0, %v338
      %340 = vmatmul.f32.gmra.mxu0 %v229
      %v341 = vpop.f32.mrf.mxu0
      %v342 = vadd.f32 0.0, %v341
      %343 = vmatmul.f32.gmra.mxu0 %v232
      %v344 = vpop.f32.mrf.mxu0
      %v345 = vadd.f32 0.0, %v344
      %346 = vmatmul.f32.gmra.mxu0 %v235
      %v347 = vpop.f32.mrf.mxu0
      %v348 = vadd.f32 0.0, %v347
      %349 = vmatmul.f32.gmra.mxu0 %v238
      %v350 = vpop.f32.mrf.mxu0
      %v351 = vadd.f32 0.0, %v350
      %352 = vmatmul.f32.gmra.mxu0 %v241
      %v353 = vpop.f32.mrf.mxu0
      %v354 = vadd.f32 0.0, %v353
      %355 = vmatmul.f32.gmra.mxu0 %v244
      %v356 = vpop.f32.mrf.mxu0
      %v357 = vadd.f32 0.0, %v356
      %358 = vmatmul.f32.gmra.mxu0 %v247
      %v359 = vpop.f32.mrf.mxu0
      %v360 = vadd.f32 0.0, %v359
      %361 = vmatmul.f32.gmra.mxu0 %v250
      %v362 = vpop.f32.mrf.mxu0
      %v363 = vadd.f32 0.0, %v362
      %364 = vmatmul.f32.gmra.mxu0 %v253
      %v365 = vpop.f32.mrf.mxu0
      %v366 = vadd.f32 0.0, %v365
      %367 = vmatmul.f32.gmra.mxu0 %v256
      %v368 = vpop.f32.mrf.mxu0
      %v369 = vadd.f32 0.0, %v368
      %370 = vmatmul.f32.gmra.mxu0 %v259
      %v371 = vpop.f32.mrf.mxu0
      %v372 = vadd.f32 0.0, %v371
      %373 = vmatmul.f32.gmra.mxu0 %v262
      %v374 = vpop.f32.mrf.mxu0
      %v375 = vadd.f32 0.0, %v374
      %376 = vmatmul.f32.gmra.mxu0 %v265
      %v377 = vpop.f32.mrf.mxu0
      %v378 = vadd.f32 0.0, %v377
      %379 = vmatmul.f32.gmra.mxu0 %v268
      %v380 = vpop.f32.mrf.mxu0
      %v381 = vadd.f32 0.0, %v380
      %382 = vmatmul.f32.gmra.mxu0 %v271
      %v383 = vpop.f32.mrf.mxu0
      %v384 = vadd.f32 0.0, %v383
      %385 = vmatmul.f32.gmra.mxu0 %v274
      %v386 = vpop.f32.mrf.mxu0
      %v387 = vadd.f32 0.0, %v386
      %388 = vmatmul.f32.gmra.mxu0 %v277
      %v389 = vpop.f32.mrf.mxu0
      %v390 = vadd.f32 0.0, %v389
      %391 = vmatmul.f32.gmra.mxu0 %v280
      %v392 = vpop.f32.mrf.mxu0
      %v393 = vadd.f32 0.0, %v392
      %394 = vmatmul.f32.gmra.mxu0 %v283
      %v395 = vpop.f32.mrf.mxu0
      %v396 = vadd.f32 0.0, %v395
      %397 = vmatmul.f32.gmra.mxu0 %v286
      %v398 = vpop.f32.mrf.mxu0
      %v399 = vadd.f32 0.0, %v398
      %400 = vmatmul.f32.gmra.mxu0 %v289
      %v401 = vpop.f32.mrf.mxu0
      %v402 = vadd.f32 0.0, %v401
      %403 = vmatmul.f32.gmra.mxu0 %v292
      %v404 = vpop.f32.mrf.mxu0
      %v405 = vadd.f32 0.0, %v404
      %406 = vmatmul.f32.gmra.mxu0 %v295
      %v407 = vpop.f32.mrf.mxu0
      %v408 = vadd.f32 0.0, %v407
      %409 = vmatmul.f32.gmra.mxu0 %v298
      %v410 = vpop.f32.mrf.mxu0
      %v411 = vadd.f32 0.0, %v410
      %412 = vmatmul.f32.gmra.mxu0 %v301
      %v413 = vpop.f32.mrf.mxu0
      %v414 = vadd.f32 0.0, %v413
      %415 = vdwg.mxu0
      %v416 = vlaneseq
      %v417 = vshrl.u32 %v416, 7
      %v418 = vadd.s32 %v417, 8
      %v419 = vadd.s32 %v417, 16
      %v420 = vadd.s32 %v417, 24
      %v421 = vadd.s32 %v417, 32
      %v422 = vadd.s32 %v417, 40
      %v423 = vadd.s32 %v417, 48
      %v424 = vadd.s32 %v417, 56
      %v425 = vadd.s32 %v417, 64
      %v426 = vadd.s32 %v417, 72
      %v427 = vadd.s32 %v417, 80
      %v428 = vadd.s32 %v417, 88
      %v429 = vadd.s32 %v417, 96
      %v430 = vadd.s32 %v417, 104
      %v431 = vadd.s32 %v417, 112
      %v432 = vadd.s32 %v417, 120
      %v433 = vadd.s32 %v417, 128
      %v434 = vadd.s32 %v417, 136
      %v435 = vadd.s32 %v417, 144
      %v436 = vadd.s32 %v417, 152
      %v437 = vadd.s32 %v417, 160
      %v438 = vadd.s32 %v417, 168
      %v439 = vadd.s32 %v417, 176
      %v440 = vadd.s32 %v417, 184
      %v441 = vadd.s32 %v417, 192
      %v442 = vadd.s32 %v417, 200
      %v443 = vadd.s32 %v417, 208
      %v444 = vadd.s32 %v417, 216
      %v445 = vadd.s32 %v417, 224
      %v446 = vadd.s32 %v417, 232
      %v447 = vadd.s32 %v417, 240
      %v448 = vadd.s32 %v417, 248
      %vm449 = vcmp.lt.s32.totalorder %v417, 256
      %vm450 = vcmp.lt.s32.totalorder %v418, 256
      %vm451 = vcmp.lt.s32.totalorder %v419, 256
      %vm452 = vcmp.lt.s32.totalorder %v420, 256
      %vm453 = vcmp.lt.s32.totalorder %v421, 256
      %vm454 = vcmp.lt.s32.totalorder %v422, 256
      %vm455 = vcmp.lt.s32.totalorder %v423, 256
      %vm456 = vcmp.lt.s32.totalorder %v424, 256
      %vm457 = vcmp.lt.s32.totalorder %v425, 256
      %vm458 = vcmp.lt.s32.totalorder %v426, 256
      %vm459 = vcmp.lt.s32.totalorder %v427, 256
      %vm460 = vcmp.lt.s32.totalorder %v428, 256
      %vm461 = vcmp.lt.s32.totalorder %v429, 256
      %vm462 = vcmp.lt.s32.totalorder %v430, 256
      %vm463 = vcmp.lt.s32.totalorder %v431, 256
      %vm464 = vcmp.lt.s32.totalorder %v432, 256
      %vm465 = vcmp.lt.s32.totalorder %v433, 256
      %vm466 = vcmp.lt.s32.totalorder %v434, 256
      %vm467 = vcmp.lt.s32.totalorder %v435, 256
      %vm468 = vcmp.lt.s32.totalorder %v436, 256
      %vm469 = vcmp.lt.s32.totalorder %v437, 256
      %vm470 = vcmp.lt.s32.totalorder %v438, 256
      %vm471 = vcmp.lt.s32.totalorder %v439, 256
      %vm472 = vcmp.lt.s32.totalorder %v440, 256
      %vm473 = vcmp.lt.s32.totalorder %v441, 256
      %vm474 = vcmp.lt.s32.totalorder %v442, 256
      %vm475 = vcmp.lt.s32.totalorder %v443, 256
      %vm476 = vcmp.lt.s32.totalorder %v444, 256
      %vm477 = vcmp.lt.s32.totalorder %v445, 256
      %vm478 = vcmp.lt.s32.totalorder %v446, 256
      %vm479 = vcmp.lt.s32.totalorder %v447, 256
      %vm480 = vcmp.lt.s32.totalorder %v448, 256
      %v481 = vsel %vm449, %v321, -inf
      %v482 = vsel %vm450, %v324, -inf
      %v483 = vsel %vm451, %v327, -inf
      %v484 = vsel %vm452, %v330, -inf
      %v485 = vsel %vm453, %v333, -inf
      %v486 = vsel %vm454, %v336, -inf
      %v487 = vsel %vm455, %v339, -inf
      %v488 = vsel %vm456, %v342, -inf
      %v489 = vsel %vm457, %v345, -inf
      %v490 = vsel %vm458, %v348, -inf
      %v491 = vsel %vm459, %v351, -inf
      %v492 = vsel %vm460, %v354, -inf
      %v493 = vsel %vm461, %v357, -inf
      %v494 = vsel %vm462, %v360, -inf
      %v495 = vsel %vm463, %v363, -inf
      %v496 = vsel %vm464, %v366, -inf
      %v497 = vsel %vm465, %v369, -inf
      %v498 = vsel %vm466, %v372, -inf
      %v499 = vsel %vm467, %v375, -inf
      %v500 = vsel %vm468, %v378, -inf
      %v501 = vsel %vm469, %v381, -inf
      %v502 = vsel %vm470, %v384, -inf
      %v503 = vsel %vm471, %v387, -inf
      %v504 = vsel %vm472, %v390, -inf
      %v505 = vsel %vm473, %v393, -inf
      %v506 = vsel %vm474, %v396, -inf
      %v507 = vsel %vm475, %v399, -inf
      %v508 = vsel %vm476, %v402, -inf
      %v509 = vsel %vm477, %v405, -inf
      %v510 = vsel %vm478, %v408, -inf
      %v511 = vsel %vm479, %v411, -inf
      %v512 = vsel %vm480, %v414, -inf
      %v513 = vmax.f32 %v481, %v485
      %v514 = vmax.f32 %v482, %v486
      %v515 = vmax.f32 %v483, %v487
      %v516 = vmax.f32 %v484, %v488
      %v517 = vmax.f32 %v513, %v489
      %v518 = vmax.f32 %v514, %v490
      %v519 = vmax.f32 %v515, %v491
      %v520 = vmax.f32 %v516, %v492
      %v521 = vmax.f32 %v517, %v493
      %v522 = vmax.f32 %v518, %v494
      %v523 = vmax.f32 %v519, %v495
      %v524 = vmax.f32 %v520, %v496
      %v525 = vmax.f32 %v521, %v497
      %v526 = vmax.f32 %v522, %v498
      %v527 = vmax.f32 %v523, %v499
      %v528 = vmax.f32 %v524, %v500
      %v529 = vmax.f32 %v525, %v501
      %v530 = vmax.f32 %v526, %v502
      %v531 = vmax.f32 %v527, %v503
      %v532 = vmax.f32 %v528, %v504
      %v533 = vmax.f32 %v529, %v505
      %v534 = vmax.f32 %v530, %v506
      %v535 = vmax.f32 %v531, %v507
      %v536 = vmax.f32 %v532, %v508
      %v537 = vmax.f32 %v533, %v509
      %v538 = vmax.f32 %v534, %v510
      %v539 = vmax.f32 %v535, %v511
      %v540 = vmax.f32 %v536, %v512
      %v541 = vmax.f32 %v537, %v538
      %v542 = vmax.f32 %v539, %v540
      %v543 = vmax.f32 %v541, %v542
      %v544 = vrot.slane %v543, 4
      %v545 = vmax.f32 %v543, %v544
      %v546 = vrot.slane %v545, 2
      %v547 = vmax.f32 %v545, %v546
      %v548 = vrot.slane %v547, 1
      %v549 = vmax.f32 %v547, %v548
      %vm550 = vcmp.ge.f32.partialorder %v481, %v549
      %vm551 = vcmp.ge.f32.partialorder %v482, %v549
      %vm552 = vcmp.ge.f32.partialorder %v483, %v549
      %vm553 = vcmp.ge.f32.partialorder %v484, %v549
      %vm554 = vcmp.ge.f32.partialorder %v485, %v549
      %vm555 = vcmp.ge.f32.partialorder %v486, %v549
      %vm556 = vcmp.ge.f32.partialorder %v487, %v549
      %vm557 = vcmp.ge.f32.partialorder %v488, %v549
      %vm558 = vcmp.ge.f32.partialorder %v489, %v549
      %vm559 = vcmp.ge.f32.partialorder %v490, %v549
      %vm560 = vcmp.ge.f32.partialorder %v491, %v549
      %vm561 = vcmp.ge.f32.partialorder %v492, %v549
      %vm562 = vcmp.ge.f32.partialorder %v493, %v549
      %vm563 = vcmp.ge.f32.partialorder %v494, %v549
      %vm564 = vcmp.ge.f32.partialorder %v495, %v549
      %vm565 = vcmp.ge.f32.partialorder %v496, %v549
      %vm566 = vcmp.ge.f32.partialorder %v497, %v549
      %vm567 = vcmp.ge.f32.partialorder %v498, %v549
      %vm568 = vcmp.ge.f32.partialorder %v499, %v549
      %vm569 = vcmp.ge.f32.partialorder %v500, %v549
      %vm570 = vcmp.ge.f32.partialorder %v501, %v549
      %vm571 = vcmp.ge.f32.partialorder %v502, %v549
      %vm572 = vcmp.ge.f32.partialorder %v503, %v549
      %vm573 = vcmp.ge.f32.partialorder %v504, %v549
      %vm574 = vcmp.ge.f32.partialorder %v505, %v549
      %vm575 = vcmp.ge.f32.partialorder %v506, %v549
      %vm576 = vcmp.ge.f32.partialorder %v507, %v549
      %vm577 = vcmp.ge.f32.partialorder %v508, %v549
      %vm578 = vcmp.ge.f32.partialorder %v509, %v549
      %vm579 = vcmp.ge.f32.partialorder %v510, %v549
      %vm580 = vcmp.ge.f32.partialorder %v511, %v549
      %vm581 = vcmp.ge.f32.partialorder %v512, %v549
      %v582 = vsel %vm550, %v417, 256
      %v583 = vsel %vm551, %v418, 256
      %v584 = vsel %vm552, %v419, 256
      %v585 = vsel %vm553, %v420, 256
      %v586 = vsel %vm554, %v421, 256
      %v587 = vsel %vm555, %v422, 256
      %v588 = vsel %vm556, %v423, 256
      %v589 = vsel %vm557, %v424, 256
      %v590 = vsel %vm558, %v425, 256
      %v591 = vsel %vm559, %v426, 256
      %v592 = vsel %vm560, %v427, 256
      %v593 = vsel %vm561, %v428, 256
      %v594 = vsel %vm562, %v429, 256
      %v595 = vsel %vm563, %v430, 256
      %v596 = vsel %vm564, %v431, 256
      %v597 = vsel %vm565, %v432, 256
      %v598 = vsel %vm566, %v433, 256
      %v599 = vsel %vm567, %v434, 256
      %v600 = vsel %vm568, %v435, 256
      %v601 = vsel %vm569, %v436, 256
      %v602 = vsel %vm570, %v437, 256
      %v603 = vsel %vm571, %v438, 256
      %v604 = vsel %vm572, %v439, 256
      %v605 = vsel %vm573, %v440, 256
      %v606 = vsel %vm574, %v441, 256
      %v607 = vsel %vm575, %v442, 256
      %v608 = vsel %vm576, %v443, 256
      %v609 = vsel %vm577, %v444, 256
      %v610 = vsel %vm578, %v445, 256
      %v611 = vsel %vm579, %v446, 256
      %v612 = vsel %vm580, %v447, 256
      %v613 = vsel %vm581, %v448, 256
      %vm614 = vcmp.lt.s32.totalorder %v582, %v586
      %v615 = vsel %vm614, %v582, %v586
      %vm616 = vcmp.lt.s32.totalorder %v583, %v587
      %v617 = vsel %vm616, %v583, %v587
      %vm618 = vcmp.lt.s32.totalorder %v584, %v588
      %v619 = vsel %vm618, %v584, %v588
      %vm620 = vcmp.lt.s32.totalorder %v585, %v589
      %v621 = vsel %vm620, %v585, %v589
      %vm622 = vcmp.lt.s32.totalorder %v615, %v590
      %v623 = vsel %vm622, %v615, %v590
      %vm624 = vcmp.lt.s32.totalorder %v617, %v591
      %v625 = vsel %vm624, %v617, %v591
      %vm626 = vcmp.lt.s32.totalorder %v619, %v592
      %v627 = vsel %vm626, %v619, %v592
      %vm628 = vcmp.lt.s32.totalorder %v621, %v593
      %v629 = vsel %vm628, %v621, %v593
      %vm630 = vcmp.lt.s32.totalorder %v623, %v594
      %v631 = vsel %vm630, %v623, %v594
      %vm632 = vcmp.lt.s32.totalorder %v625, %v595
      %v633 = vsel %vm632, %v625, %v595
      %vm634 = vcmp.lt.s32.totalorder %v627, %v596
      %v635 = vsel %vm634, %v627, %v596
      %vm636 = vcmp.lt.s32.totalorder %v629, %v597
      %v637 = vsel %vm636, %v629, %v597
      %vm638 = vcmp.lt.s32.totalorder %v631, %v598
      %v639 = vsel %vm638, %v631, %v598
      %vm640 = vcmp.lt.s32.totalorder %v633, %v599
      %v641 = vsel %vm640, %v633, %v599
      %vm642 = vcmp.lt.s32.totalorder %v635, %v600
      %v643 = vsel %vm642, %v635, %v600
      %vm644 = vcmp.lt.s32.totalorder %v637, %v601
      %v645 = vsel %vm644, %v637, %v601
      %vm646 = vcmp.lt.s32.totalorder %v639, %v602
      %v647 = vsel %vm646, %v639, %v602
      %vm648 = vcmp.lt.s32.totalorder %v641, %v603
      %v649 = vsel %vm648, %v641, %v603
      %vm650 = vcmp.lt.s32.totalorder %v643, %v604
      %v651 = vsel %vm650, %v643, %v604
      %vm652 = vcmp.lt.s32.totalorder %v645, %v605
      %v653 = vsel %vm652, %v645, %v605
      %vm654 = vcmp.lt.s32.totalorder %v647, %v606
      %v655 = vsel %vm654, %v647, %v606
      %vm656 = vcmp.lt.s32.totalorder %v649, %v607
      %v657 = vsel %vm656, %v649, %v607
      %vm658 = vcmp.lt.s32.totalorder %v651, %v608
      %v659 = vsel %vm658, %v651, %v608
      %vm660 = vcmp.lt.s32.totalorder %v653, %v609
      %v661 = vsel %vm660, %v653, %v609
      %vm662 = vcmp.lt.s32.totalorder %v655, %v610
      %v663 = vsel %vm662, %v655, %v610
      %vm664 = vcmp.lt.s32.totalorder %v657, %v611
      %v665 = vsel %vm664, %v657, %v611
      %vm666 = vcmp.lt.s32.totalorder %v659, %v612
      %v667 = vsel %vm666, %v659, %v612
      %vm668 = vcmp.lt.s32.totalorder %v661, %v613
      %v669 = vsel %vm668, %v661, %v613
      %vm670 = vcmp.lt.s32.totalorder %v663, %v665
      %v671 = vsel %vm670, %v663, %v665
      %vm672 = vcmp.lt.s32.totalorder %v667, %v669
      %v673 = vsel %vm672, %v667, %v669
      %vm674 = vcmp.lt.s32.totalorder %v671, %v673
      %v675 = vsel %vm674, %v671, %v673
      %v676 = vrot.slane %v675, 4
      %vm677 = vcmp.lt.s32.totalorder %v675, %v676
      %v678 = vsel %vm677, %v675, %v676
      %v679 = vrot.slane %v678, 2
      %vm680 = vcmp.lt.s32.totalorder %v678, %v679
      %v681 = vsel %vm680, %v678, %v679
      %v682 = vrot.slane %v681, 1
      %vm683 = vcmp.lt.s32.totalorder %v681, %v682
      %v684 = vsel %vm683, %v681, %v682
      %685 = vst [vmem:[%s172] sm:$0x1] %v684
      %p686 = scmp.lt.s32.totalorder %s17, 0
      %s687 = scalar_select %p686, %s17, 0
      %p688 = scmp.lt.s32.totalorder %s18, 1
      %s689 = scalar_select %p688, %s18, 1
      %s690 = smul.addr %s687, 2
      %s691 = sadd.s32 %s689, %s690
      %s692 = scalar_lea.vmem %s2, %s691
      // Predicated region
      $region29: #{_lambda_.5} parent=27 // pred_check
        %p693 = pneg %p94
      $region30: #{_lambda_.5} parent=27 // pred_check_branch
        %695 = sbr.rel (%p693) target = $region32
      $region31: #{_lambda_.5} parent=27 // pred_region
        _
      $region32: #{_lambda_.5} parent=27 // pred_fallthru
        _
    $region28: #{_lambda_.5} parent=5 // pred_fallthru
      _
    %p696 = scmp.le.s32.totalorder 2, %s8
    // Predicated region
    $region33: #{_lambda_.5} parent=5 // pred_check
      %p697 = pneg %p696
    $region34: #{_lambda_.5} parent=5 // pred_check_branch
      %699 = sbr.rel (%p697) target = $region36
    $region35: #{_lambda_.5} parent=5 // pred_region
      %s700 = ssub.s32 %s8, 2
      // Predicated region
      $region37: #{_lambda_.5} parent=35 // pred_check
        %p701 = pneg %p100
      $region38: #{_lambda_.5} parent=35 // pred_check_branch
        %703 = sbr.rel (%p701) target = $region40
      $region39: #{_lambda_.5} parent=35 // pred_region
        %p704 = scmp.lt.s32.totalorder %s19, 0
        %s705 = scalar_select %p704, %s19, 0
        %p706 = scmp.lt.s32.totalorder %s20, 1
        %s707 = scalar_select %p706, %s20, 1
        %s708 = smul.addr %s705, 2
        %s709 = sadd.s32 %s707, %s708
        %s710 = scalar_lea.vmem %s2, %s709
      $region40: #{_lambda_.5} parent=35 // pred_fallthru
        _
    $region36: #{_lambda_.5} parent=5 // pred_fallthru
      _
  $region6: #{_lambda_.5} parent=0 // loop_footer
    %s12 = sadd.s32 1, %s8
  $region7: #{_lambda_.5} parent=0 // loop_footer_branch
    %7 = sbr.rel target = $region3
  $region8: #{_lambda_.5} parent=0 // loop_exit
    _

</llo_original>
